<compile_context>
chip_gen: v6e
topology: v6e:2x2x1
jax: 0.10.0
libtpu: 0.0.40
codegen_flags: <defaults>
</compile_context>

<pallas_src>
import functools

import jax
import jax.numpy as jnp
import numpy as np
from jax.experimental import pallas as pl
from jax.experimental.pallas import tpu as pltpu

BN_EPS = 1e-5


# ----------------------------------------------------------------------------- shared conv
def _stacked_conv(xl, xr, w_ref):
    """Fused dual 1x1 conv -> stacked pre-BN output y = [y_l; y_r], (2C, T) f32.

    w_ref holds 4 packed (2C, C) matrices:
      w_ref[0] = [Wlp; Wrn]   multiplies relu(x_l)
      w_ref[1] = [Wln; Wrp]   multiplies relu(x_r)
      w_ref[2] = [0 ; -Wrn]   multiplies x_l
      w_ref[3] = [-Wln; 0 ]   multiplies x_r
    so that  y_l = Wlp·relu(x_l) + Wln·(relu(x_r) - x_r)
             y_r = Wrp·relu(x_r) + Wrn·(relu(x_l) - x_l)
    (conv biases omitted — cancelled by train-mode BN).
    """
    rl = jnp.maximum(xl, 0.0)
    rr = jnp.maximum(xr, 0.0)
    # Small dots; MXU has idle capacity anyway (kernel is HBM-bandwidth bound).
    y = (jnp.dot(w_ref[0], rl, preferred_element_type=jnp.float32)
         + jnp.dot(w_ref[1], rr, preferred_element_type=jnp.float32)
         + jnp.dot(w_ref[2], xl, preferred_element_type=jnp.float32)
         + jnp.dot(w_ref[3], xr, preferred_element_type=jnp.float32))
    return y


# ----------------------------------------------------------------------------- pass 1: stats
def _ytmt_stats_kernel(xl_ref, xr_ref, w_ref, gb_ref, ss_ref,
                       sum_acc, sq_acc, *, inv_count):
    n = pl.program_id(0)
    t = pl.program_id(1)

    @pl.when(jnp.logical_and(n == 0, t == 0))
    def _init():
        sum_acc[...] = jnp.zeros_like(sum_acc)
        sq_acc[...] = jnp.zeros_like(sq_acc)

    y = _stacked_conv(xl_ref[...], xr_ref[...], w_ref)          # (2C, T)
    sum_acc[...] += jnp.sum(y, axis=1, keepdims=True)           # (2C, 1)
    sq_acc[...] += jnp.sum(y * y, axis=1, keepdims=True)        # (2C, 1)

    @pl.when(jnp.logical_and(n == pl.num_programs(0) - 1,
                             t == pl.num_programs(1) - 1))
    def _finalize():
        mean = sum_acc[...] * inv_count
        var = sq_acc[...] * inv_count - mean * mean
        gamma = gb_ref[0]                                        # (2C, 1)
        beta = gb_ref[1]                                         # (2C, 1)
        scale = gamma * jax.lax.rsqrt(var + BN_EPS)
        shift = beta - mean * scale
        ss_ref[0] = scale
        ss_ref[1] = shift


# ----------------------------------------------------------------------------- pass 2: apply
def _ytmt_apply_kernel(ss_ref, xl_ref, xr_ref, w_ref, outl_ref, outr_ref):
    y = _stacked_conv(xl_ref[...], xr_ref[...], w_ref)           # (2C, T)
    out = y * ss_ref[0] + ss_ref[1]                              # folded BN
    c = outl_ref.shape[0]
    outl_ref[...] = out[:c, :]
    outr_ref[...] = out[c:, :]


# ----------------------------------------------------------------------------- wrapper
def _pick_spatial_tile(hw, max_tile=2048):
    """Largest lane tile (multiple of 128) dividing hw, capped at max_tile."""
    if hw <= max_tile or hw % 128 != 0:
        return hw
    t = (max_tile // 128) * 128
    while t >= 128:
        if hw % t == 0:
            return t
        t -= 128
    return hw


def ytmt_block_pallas(input_l, input_r, p):
    """input_l, input_r: (N, C, H, W) float32 (PyTorch NCHW layout)."""
    N, C, H, W = input_l.shape
    HW = H * W
    C2 = 2 * C

    # Free reshapes only (contiguous) — no host-side transposes / HBM passes.
    xl = input_l.reshape(N, C, HW)
    xr = input_r.reshape(N, C, HW)

    # ---- tiny host-side parameter packing ---------------------------------
    Wlp, Wln = p["w_l"][:, :C], p["w_l"][:, C:]
    Wrp, Wrn = p["w_r"][:, :C], p["w_r"][:, C:]
    Z = jnp.zeros((C, C), jnp.float32)
    w_all = jnp.stack([
        jnp.concatenate([Wlp, Wrn], axis=0),   # * relu(x_l)
        jnp.concatenate([Wln, Wrp], axis=0),   # * relu(x_r)
        jnp.concatenate([Z, -Wrn], axis=0),    # * x_l
        jnp.concatenate([-Wln, Z], axis=0),    # * x_r
    ], axis=0)                                  # (4, 2C, C)
    # NOTE: conv biases b_l / b_r intentionally dropped (cancelled by BN).

    gb = jnp.stack([
        jnp.concatenate([p["g1"], p["g2"]]).reshape(C2, 1),      # gamma
        jnp.concatenate([p["be1"], p["be2"]]).reshape(C2, 1),    # beta
    ], axis=0)                                  # (2, 2C, 1)

    T = _pick_spatial_tile(HW)
    grid = (N, HW // T)

    x_spec = pl.BlockSpec((None, C, T), lambda n, t: (n, 0, t))
    w_spec = pl.BlockSpec((4, C2, C), lambda n, t: (0, 0, 0))
    gb_spec = pl.BlockSpec((2, C2, 1), lambda n, t: (0, 0, 0))

    vmem_limit = 32 * 1024 * 1024   # safe on v5e/v6e (128 MiB) and v7x (64 MiB)

    # ---- pass 1: global BN batch stats -> folded scale/shift --------------
    scale_shift = pl.pallas_call(
        functools.partial(_ytmt_stats_kernel, inv_count=1.0 / float(N * HW)),
        out_shape=jax.ShapeDtypeStruct((2, C2, 1), jnp.float32),
        grid_spec=pltpu.PrefetchScalarGridSpec(
            num_scalar_prefetch=0, grid=grid,
            in_specs=[x_spec, x_spec, w_spec, gb_spec],
            out_specs=gb_spec,
            scratch_shapes=[pltpu.VMEM((C2, 1), jnp.float32),
                            pltpu.VMEM((C2, 1), jnp.float32)]),
        compiler_params=pltpu.CompilerParams(
            dimension_semantics=("arbitrary", "arbitrary"),
            vmem_limit_bytes=vmem_limit),
    )(xl, xr, w_all, gb)

    # ---- pass 2: recompute conv tile, apply folded BN, lane-dense writes --
    out_l, out_r = pl.pallas_call(
        _ytmt_apply_kernel,
        out_shape=(jax.ShapeDtypeStruct((N, C, HW), jnp.float32),
                   jax.ShapeDtypeStruct((N, C, HW), jnp.float32)),
        grid_spec=pltpu.PrefetchScalarGridSpec(
            num_scalar_prefetch=0, grid=grid,
            in_specs=[gb_spec, x_spec, x_spec, w_spec],
            out_specs=(x_spec, x_spec)),
        compiler_params=pltpu.CompilerParams(
            dimension_semantics=("parallel", "parallel"),
            vmem_limit_bytes=vmem_limit),
    )(scale_shift, xl, xr, w_all)

    return out_l.reshape(N, C, H, W), out_r.reshape(N, C, H, W)


# ----------------------------------------------------------------------------- reference
def _bn_ref(x, gamma, beta):
    mean = jnp.mean(x, axis=(0, 2, 3), keepdims=True)
    var = jnp.mean((x - mean) ** 2, axis=(0, 2, 3), keepdims=True)
    g = gamma.reshape(1, -1, 1, 1)
    b = beta.reshape(1, -1, 1, 1)
    return (x - mean) * jax.lax.rsqrt(var + BN_EPS) * g + b


def ytmt_block_reference(input_l, input_r, p):
    lp = jnp.maximum(input_l, 0.0)
    ln = lp - input_l
    rp = jnp.maximum(input_r, 0.0)
    rn = rp - input_r
    cat_l = jnp.concatenate([lp, rn], axis=1)
    cat_r = jnp.concatenate([rp, ln], axis=1)
    out_l = jnp.einsum("oc,nchw->nohw", p["w_l"], cat_l) + p["b_l"].reshape(1, -1, 1, 1)
    out_r = jnp.einsum("oc,nchw->nohw", p["w_r"], cat_r) + p["b_r"].reshape(1, -1, 1, 1)
    out_l = _bn_ref(out_l, p["g1"], p["be1"])
    out_r = _bn_ref(out_r, p["g2"], p["be2"])
    return out_l, out_r


# ----------------------------------------------------------------------------- main
def init_params(key, channels):
    C = channels
    ks = jax.random.split(key, 8)
    nrm = jax.random.normal
    return dict(
        w_l=0.2 * nrm(ks[0], (C, 2 * C), jnp.float32),   # fusion_l 1x1 conv weight
        b_l=0.1 * nrm(ks[1], (C,), jnp.float32),
        w_r=0.2 * nrm(ks[2], (C, 2 * C), jnp.float32),   # fusion_r 1x1 conv weight
        b_r=0.1 * nrm(ks[3], (C,), jnp.float32),
        g1=1.0 + 0.1 * nrm(ks[4], (C,), jnp.float32),    # bn1 gamma / beta
        be1=0.1 * nrm(ks[5], (C,), jnp.float32),
        g2=1.0 + 0.1 * nrm(ks[6], (C,), jnp.float32),    # bn2 gamma / beta
        be2=0.1 * nrm(ks[7], (C,), jnp.float32),
    )


if __name__ == "__main__":
    key = jax.random.PRNGKey(0)
    k_l, k_r, k_p = jax.random.split(key, 3)

    N, C, H, W = 2, 4, 16, 16
    input_l = jax.random.normal(k_l, (N, C, H, W), jnp.float32)
    input_r = jax.random.normal(k_r, (N, C, H, W), jnp.float32)
    params = init_params(k_p, C)

    out_l, out_r = jax.jit(ytmt_block_pallas)(input_l, input_r, params)
    out_l = jax.block_until_ready(out_l)
    out_r = jax.block_until_ready(out_r)

    ref_l, ref_r = ytmt_block_reference(input_l, input_r, params)
    ref_l = jax.block_until_ready(ref_l)
    ref_r = jax.block_until_ready(ref_r)

    assert out_l.shape == (N, C, H, W) and out_r.shape == (N, C, H, W)
    for got, ref, name in ((out_l, ref_l, "out_l"), (out_r, ref_r, "out_r")):
        if not np.allclose(np.asarray(got), np.asarray(ref), atol=1e-3, rtol=1e-3):
            raise AssertionError(
                f"{name} mismatch: max abs diff = "
                f"{np.max(np.abs(np.asarray(got) - np.asarray(ref)))}")

    print("KERNEL_OK")
</pallas_src>

<mosaic_0001>
module attributes {stable_mosaic.version = 11 : i64} {
  func.func @_ytmt_apply_kernel(%arg0: i32, %arg1: i32, %arg2: memref<2x8x1xf32, #tpu.memory_space<vmem>>, %arg3: memref<1x4x256xf32, #tpu.memory_space<vmem>>, %arg4: memref<1x4x256xf32, #tpu.memory_space<vmem>>, %arg5: memref<4x8x4xf32, #tpu.memory_space<vmem>>, %arg6: memref<1x4x256xf32, #tpu.memory_space<vmem>>, %arg7: memref<1x4x256xf32, #tpu.memory_space<vmem>>) attributes {dimension_semantics = [#tpu.dimension_semantics<parallel>, #tpu.dimension_semantics<parallel>], iteration_bounds = array<i64: 2, 1>, scalar_prefetch = 0 : i64, scratch_operands = 0 : i64, tpu.core_type = #tpu.core_type<tc>, window_params = [{pipeline_mode = #tpu.pipeline_mode<synchronous>, transform_indices = @transform_0, window_bounds = array<i64: 2, 8, 1>}, {transform_indices = @transform_1, window_bounds = array<i64: 1, 4, 256>}, {transform_indices = @transform_2, window_bounds = array<i64: 1, 4, 256>}, {pipeline_mode = #tpu.pipeline_mode<synchronous>, transform_indices = @transform_3, window_bounds = array<i64: 4, 8, 4>}, {transform_indices = @transform_4, window_bounds = array<i64: 1, 4, 256>}, {transform_indices = @transform_5, window_bounds = array<i64: 1, 4, 256>}]} {
    %c0 = arith.constant 0 : index
    %c0_0 = arith.constant 0 : index
    %c0_1 = arith.constant 0 : index
    %0 = vector.load %arg3[%c0, %c0_0, %c0_1] : memref<1x4x256xf32, #tpu.memory_space<vmem>>, vector<1x4x256xf32>
    %1 = vector.shape_cast %0 : vector<1x4x256xf32> to vector<4x256xf32>
    %c0_2 = arith.constant 0 : index
    %c0_3 = arith.constant 0 : index
    %c0_4 = arith.constant 0 : index
    %2 = vector.load %arg4[%c0_2, %c0_3, %c0_4] : memref<1x4x256xf32, #tpu.memory_space<vmem>>, vector<1x4x256xf32>
    %3 = vector.shape_cast %2 : vector<1x4x256xf32> to vector<4x256xf32>
    %cst = arith.constant 0.000000e+00 : f32
    %4 = vector.broadcast %cst : f32 to vector<4x256xf32>
    %5 = arith.maximumf %1, %4 : vector<4x256xf32>
    %cst_5 = arith.constant 0.000000e+00 : f32
    %6 = vector.broadcast %cst_5 : f32 to vector<4x256xf32>
    %7 = arith.maximumf %3, %6 : vector<4x256xf32>
    %c0_6 = arith.constant 0 : index
    %c0_7 = arith.constant 0 : index
    %c0_8 = arith.constant 0 : index
    %8 = vector.load %arg5[%c0_6, %c0_7, %c0_8] : memref<4x8x4xf32, #tpu.memory_space<vmem>>, vector<1x8x4xf32>
    %9 = vector.shape_cast %8 : vector<1x8x4xf32> to vector<8x4xf32>
    %cst_9 = arith.constant dense<0.000000e+00> : vector<8x256xf32>
    %10 = tpu.matmul %9, %5, %cst_9 {dimension_numbers = #tpu.dot_dimension_numbers<[1], [0], [0], [1], [0, 0, 1, 1], [], []>} : vector<8x4xf32>, vector<4x256xf32>, vector<8x256xf32> -> vector<8x256xf32>
    %c1 = arith.constant 1 : index
    %c0_10 = arith.constant 0 : index
    %c0_11 = arith.constant 0 : index
    %11 = vector.load %arg5[%c1, %c0_10, %c0_11] : memref<4x8x4xf32, #tpu.memory_space<vmem>>, vector<1x8x4xf32>
    %12 = vector.shape_cast %11 : vector<1x8x4xf32> to vector<8x4xf32>
    %cst_12 = arith.constant dense<0.000000e+00> : vector<8x256xf32>
    %13 = tpu.matmul %12, %7, %cst_12 {dimension_numbers = #tpu.dot_dimension_numbers<[1], [0], [0], [1], [0, 0, 1, 1], [], []>} : vector<8x4xf32>, vector<4x256xf32>, vector<8x256xf32> -> vector<8x256xf32>
    %14 = arith.addf %10, %13 : vector<8x256xf32>
    %c2 = arith.constant 2 : index
    %c0_13 = arith.constant 0 : index
    %c0_14 = arith.constant 0 : index
    %15 = vector.load %arg5[%c2, %c0_13, %c0_14] : memref<4x8x4xf32, #tpu.memory_space<vmem>>, vector<1x8x4xf32>
    %16 = vector.shape_cast %15 : vector<1x8x4xf32> to vector<8x4xf32>
    %cst_15 = arith.constant dense<0.000000e+00> : vector<8x256xf32>
    %17 = tpu.matmul %16, %1, %cst_15 {dimension_numbers = #tpu.dot_dimension_numbers<[1], [0], [0], [1], [0, 0, 1, 1], [], []>} : vector<8x4xf32>, vector<4x256xf32>, vector<8x256xf32> -> vector<8x256xf32>
    %18 = arith.addf %14, %17 : vector<8x256xf32>
    %c3 = arith.constant 3 : index
    %c0_16 = arith.constant 0 : index
    %c0_17 = arith.constant 0 : index
    %19 = vector.load %arg5[%c3, %c0_16, %c0_17] : memref<4x8x4xf32, #tpu.memory_space<vmem>>, vector<1x8x4xf32>
    %20 = vector.shape_cast %19 : vector<1x8x4xf32> to vector<8x4xf32>
    %cst_18 = arith.constant dense<0.000000e+00> : vector<8x256xf32>
    %21 = tpu.matmul %20, %3, %cst_18 {dimension_numbers = #tpu.dot_dimension_numbers<[1], [0], [0], [1], [0, 0, 1, 1], [], []>} : vector<8x4xf32>, vector<4x256xf32>, vector<8x256xf32> -> vector<8x256xf32>
    %22 = arith.addf %18, %21 : vector<8x256xf32>
    %c0_19 = arith.constant 0 : index
    %c0_20 = arith.constant 0 : index
    %c0_21 = arith.constant 0 : index
    %23 = vector.load %arg2[%c0_19, %c0_20, %c0_21] : memref<2x8x1xf32, #tpu.memory_space<vmem>>, vector<1x8x1xf32>
    %24 = vector.shape_cast %23 : vector<1x8x1xf32> to vector<8x1xf32>
    %25 = vector.broadcast %24 : vector<8x1xf32> to vector<8x256xf32>
    %26 = arith.mulf %22, %25 : vector<8x256xf32>
    %c1_22 = arith.constant 1 : index
    %c0_23 = arith.constant 0 : index
    %c0_24 = arith.constant 0 : index
    %27 = vector.load %arg2[%c1_22, %c0_23, %c0_24] : memref<2x8x1xf32, #tpu.memory_space<vmem>>, vector<1x8x1xf32>
    %28 = vector.shape_cast %27 : vector<1x8x1xf32> to vector<8x1xf32>
    %29 = vector.broadcast %28 : vector<8x1xf32> to vector<8x256xf32>
    %30 = arith.addf %26, %29 : vector<8x256xf32>
    %31 = vector.extract_strided_slice %30 {offsets = [0, 0], sizes = [4, 256], strides = [1, 1]} : vector<8x256xf32> to vector<4x256xf32>
    %c0_25 = arith.constant 0 : index
    %c0_26 = arith.constant 0 : index
    %c0_27 = arith.constant 0 : index
    %32 = vector.load %arg6[%c0_25, %c0_26, %c0_27] : memref<1x4x256xf32, #tpu.memory_space<vmem>>, vector<1x4x256xf32>
    %33 = vector.shape_cast %32 : vector<1x4x256xf32> to vector<4x256xf32>
    %34 = vector.shape_cast %31 : vector<4x256xf32> to vector<1x4x256xf32>
    tpu.vector_store %arg6[%c0_25, %c0_26, %c0_27], %34 {strides = array<i32>} : memref<1x4x256xf32, #tpu.memory_space<vmem>>, vector<1x4x256xf32>,
    %35 = vector.extract_strided_slice %30 {offsets = [4, 0], sizes = [4, 256], strides = [1, 1]} : vector<8x256xf32> to vector<4x256xf32>
    %c0_28 = arith.constant 0 : index
    %c0_29 = arith.constant 0 : index
    %c0_30 = arith.constant 0 : index
    %36 = vector.load %arg7[%c0_28, %c0_29, %c0_30] : memref<1x4x256xf32, #tpu.memory_space<vmem>>, vector<1x4x256xf32>
    %37 = vector.shape_cast %36 : vector<1x4x256xf32> to vector<4x256xf32>
    %38 = vector.shape_cast %35 : vector<4x256xf32> to vector<1x4x256xf32>
    tpu.vector_store %arg7[%c0_28, %c0_29, %c0_30], %38 {strides = array<i32>} : memref<1x4x256xf32, #tpu.memory_space<vmem>>, vector<1x4x256xf32>,
    return
  }
  func.func @transform_0(%arg0: i32, %arg1: i32) -> (i32, i32, i32) {
    %c0_i32 = arith.constant 0 : i32
    %c0_i32_0 = arith.constant 0 : i32
    %c0_i32_1 = arith.constant 0 : i32
    %c0_i32_2 = arith.constant 0 : i32
    return %c0_i32, %c0_i32_0, %c0_i32_1 : i32, i32, i32
  }
  func.func @transform_1(%arg0: i32, %arg1: i32) -> (i32, i32, i32) {
    %c0_i32 = arith.constant 0 : i32
    %c0_i32_0 = arith.constant 0 : i32
    return %arg0, %c0_i32, %arg1 : i32, i32, i32
  }
  func.func @transform_2(%arg0: i32, %arg1: i32) -> (i32, i32, i32) {
    %c0_i32 = arith.constant 0 : i32
    %c0_i32_0 = arith.constant 0 : i32
    return %arg0, %c0_i32, %arg1 : i32, i32, i32
  }
  func.func @transform_3(%arg0: i32, %arg1: i32) -> (i32, i32, i32) {
    %c0_i32 = arith.constant 0 : i32
    %c0_i32_0 = arith.constant 0 : i32
    %c0_i32_1 = arith.constant 0 : i32
    %c0_i32_2 = arith.constant 0 : i32
    return %c0_i32, %c0_i32_0, %c0_i32_1 : i32, i32, i32
  }
  func.func @transform_4(%arg0: i32, %arg1: i32) -> (i32, i32, i32) {
    %c0_i32 = arith.constant 0 : i32
    %c0_i32_0 = arith.constant 0 : i32
    return %arg0, %c0_i32, %arg1 : i32, i32, i32
  }
  func.func @transform_5(%arg0: i32, %arg1: i32) -> (i32, i32, i32) {
    %c0_i32 = arith.constant 0 : i32
    %c0_i32_0 = arith.constant 0 : i32
    return %arg0, %c0_i32, %arg1 : i32, i32, i32
  }
}

module attributes {stable_mosaic.version = 11 : i64} {
  func.func @_ytmt_stats_kernel(%arg0: i32, %arg1: i32, %arg2: memref<1x4x256xf32, #tpu.memory_space<vmem>>, %arg3: memref<1x4x256xf32, #tpu.memory_space<vmem>>, %arg4: memref<4x8x4xf32, #tpu.memory_space<vmem>>, %arg5: memref<2x8x1xf32, #tpu.memory_space<vmem>>, %arg6: memref<2x8x1xf32, #tpu.memory_space<vmem>>, %arg7: memref<8x1xf32, #tpu.memory_space<vmem>>, %arg8: memref<8x1xf32, #tpu.memory_space<vmem>>) attributes {dimension_semantics = [#tpu.dimension_semantics<arbitrary>, #tpu.dimension_semantics<arbitrary>], iteration_bounds = array<i64: 2, 1>, scalar_prefetch = 0 : i64, scratch_operands = 2 : i64, tpu.core_type = #tpu.core_type<tc>, window_params = [{transform_indices = @transform_0, window_bounds = array<i64: 1, 4, 256>}, {transform_indices = @transform_1, window_bounds = array<i64: 1, 4, 256>}, {pipeline_mode = #tpu.pipeline_mode<synchronous>, transform_indices = @transform_2, window_bounds = array<i64: 4, 8, 4>}, {pipeline_mode = #tpu.pipeline_mode<synchronous>, transform_indices = @transform_3, window_bounds = array<i64: 2, 8, 1>}, {pipeline_mode = #tpu.pipeline_mode<synchronous>, transform_indices = @transform_4, window_bounds = array<i64: 2, 8, 1>}]} {
    %c0_i32 = arith.constant 0 : i32
    %0 = arith.cmpi eq, %arg0, %c0_i32 : i32
    %c0_i32_0 = arith.constant 0 : i32
    %1 = arith.cmpi eq, %arg1, %c0_i32_0 : i32
    %2 = arith.andi %0, %1 : i1
    %3 = arith.extui %2 : i1 to i32
    %c0_i32_1 = arith.constant 0 : i32
    %4 = arith.cmpi ne, %3, %c0_i32_1 : i32
    scf.if %4 {
      %cst_33 = arith.constant 0.000000e+00 : f32
      %44 = vector.broadcast %cst_33 : f32 to vector<8x1xf32>
      %c0_34 = arith.constant 0 : index
      %c0_35 = arith.constant 0 : index
      %45 = vector.load %arg7[%c0_34, %c0_35] : memref<8x1xf32, #tpu.memory_space<vmem>>, vector<8x1xf32>
      tpu.vector_store %arg7[%c0_34, %c0_35], %44 {strides = array<i32>} : memref<8x1xf32, #tpu.memory_space<vmem>>, vector<8x1xf32>,
      %cst_36 = arith.constant 0.000000e+00 : f32
      %46 = vector.broadcast %cst_36 : f32 to vector<8x1xf32>
      %c0_37 = arith.constant 0 : index
      %c0_38 = arith.constant 0 : index
      %47 = vector.load %arg8[%c0_37, %c0_38] : memref<8x1xf32, #tpu.memory_space<vmem>>, vector<8x1xf32>
      tpu.vector_store %arg8[%c0_37, %c0_38], %46 {strides = array<i32>} : memref<8x1xf32, #tpu.memory_space<vmem>>, vector<8x1xf32>,
    } else {
    }
    %c0 = arith.constant 0 : index
    %c0_2 = arith.constant 0 : index
    %c0_3 = arith.constant 0 : index
    %5 = vector.load %arg2[%c0, %c0_2, %c0_3] : memref<1x4x256xf32, #tpu.memory_space<vmem>>, vector<1x4x256xf32>
    %6 = vector.shape_cast %5 : vector<1x4x256xf32> to vector<4x256xf32>
    %c0_4 = arith.constant 0 : index
    %c0_5 = arith.constant 0 : index
    %c0_6 = arith.constant 0 : index
    %7 = vector.load %arg3[%c0_4, %c0_5, %c0_6] : memref<1x4x256xf32, #tpu.memory_space<vmem>>, vector<1x4x256xf32>
    %8 = vector.shape_cast %7 : vector<1x4x256xf32> to vector<4x256xf32>
    %cst = arith.constant 0.000000e+00 : f32
    %9 = vector.broadcast %cst : f32 to vector<4x256xf32>
    %10 = arith.maximumf %6, %9 : vector<4x256xf32>
    %cst_7 = arith.constant 0.000000e+00 : f32
    %11 = vector.broadcast %cst_7 : f32 to vector<4x256xf32>
    %12 = arith.maximumf %8, %11 : vector<4x256xf32>
    %c0_8 = arith.constant 0 : index
    %c0_9 = arith.constant 0 : index
    %c0_10 = arith.constant 0 : index
    %13 = vector.load %arg4[%c0_8, %c0_9, %c0_10] : memref<4x8x4xf32, #tpu.memory_space<vmem>>, vector<1x8x4xf32>
    %14 = vector.shape_cast %13 : vector<1x8x4xf32> to vector<8x4xf32>
    %cst_11 = arith.constant dense<0.000000e+00> : vector<8x256xf32>
    %15 = tpu.matmul %14, %10, %cst_11 {dimension_numbers = #tpu.dot_dimension_numbers<[1], [0], [0], [1], [0, 0, 1, 1], [], []>} : vector<8x4xf32>, vector<4x256xf32>, vector<8x256xf32> -> vector<8x256xf32>
    %c1 = arith.constant 1 : index
    %c0_12 = arith.constant 0 : index
    %c0_13 = arith.constant 0 : index
    %16 = vector.load %arg4[%c1, %c0_12, %c0_13] : memref<4x8x4xf32, #tpu.memory_space<vmem>>, vector<1x8x4xf32>
    %17 = vector.shape_cast %16 : vector<1x8x4xf32> to vector<8x4xf32>
    %cst_14 = arith.constant dense<0.000000e+00> : vector<8x256xf32>
    %18 = tpu.matmul %17, %12, %cst_14 {dimension_numbers = #tpu.dot_dimension_numbers<[1], [0], [0], [1], [0, 0, 1, 1], [], []>} : vector<8x4xf32>, vector<4x256xf32>, vector<8x256xf32> -> vector<8x256xf32>
    %19 = arith.addf %15, %18 : vector<8x256xf32>
    %c2 = arith.constant 2 : index
    %c0_15 = arith.constant 0 : index
    %c0_16 = arith.constant 0 : index
    %20 = vector.load %arg4[%c2, %c0_15, %c0_16] : memref<4x8x4xf32, #tpu.memory_space<vmem>>, vector<1x8x4xf32>
    %21 = vector.shape_cast %20 : vector<1x8x4xf32> to vector<8x4xf32>
    %cst_17 = arith.constant dense<0.000000e+00> : vector<8x256xf32>
    %22 = tpu.matmul %21, %6, %cst_17 {dimension_numbers = #tpu.dot_dimension_numbers<[1], [0], [0], [1], [0, 0, 1, 1], [], []>} : vector<8x4xf32>, vector<4x256xf32>, vector<8x256xf32> -> vector<8x256xf32>
    %23 = arith.addf %19, %22 : vector<8x256xf32>
    %c3 = arith.constant 3 : index
    %c0_18 = arith.constant 0 : index
    %c0_19 = arith.constant 0 : index
    %24 = vector.load %arg4[%c3, %c0_18, %c0_19] : memref<4x8x4xf32, #tpu.memory_space<vmem>>, vector<1x8x4xf32>
    %25 = vector.shape_cast %24 : vector<1x8x4xf32> to vector<8x4xf32>
    %cst_20 = arith.constant dense<0.000000e+00> : vector<8x256xf32>
    %26 = tpu.matmul %25, %8, %cst_20 {dimension_numbers = #tpu.dot_dimension_numbers<[1], [0], [0], [1], [0, 0, 1, 1], [], []>} : vector<8x4xf32>, vector<4x256xf32>, vector<8x256xf32> -> vector<8x256xf32>
    %27 = arith.addf %23, %26 : vector<8x256xf32>
    %c0_21 = arith.constant 0 : index
    %c0_22 = arith.constant 0 : index
    %28 = vector.load %arg7[%c0_21, %c0_22] : memref<8x1xf32, #tpu.memory_space<vmem>>, vector<8x1xf32>
    %cst_23 = arith.constant dense<0.000000e+00> : vector<8xf32>
    %29 = vector.multi_reduction <add>, %27, %cst_23 [1] : vector<8x256xf32> to vector<8xf32>
    %30 = vector.shape_cast %29 : vector<8xf32> to vector<8x1xf32>
    %31 = arith.addf %28, %30 : vector<8x1xf32>
    %c0_24 = arith.constant 0 : index
    %c0_25 = arith.constant 0 : index
    %32 = vector.load %arg7[%c0_24, %c0_25] : memref<8x1xf32, #tpu.memory_space<vmem>>, vector<8x1xf32>
    tpu.vector_store %arg7[%c0_24, %c0_25], %31 {strides = array<i32>} : memref<8x1xf32, #tpu.memory_space<vmem>>, vector<8x1xf32>,
    %c0_26 = arith.constant 0 : index
    %c0_27 = arith.constant 0 : index
    %33 = vector.load %arg8[%c0_26, %c0_27] : memref<8x1xf32, #tpu.memory_space<vmem>>, vector<8x1xf32>
    %34 = arith.mulf %27, %27 : vector<8x256xf32>
    %cst_28 = arith.constant dense<0.000000e+00> : vector<8xf32>
    %35 = vector.multi_reduction <add>, %34, %cst_28 [1] : vector<8x256xf32> to vector<8xf32>
    %36 = vector.shape_cast %35 : vector<8xf32> to vector<8x1xf32>
    %37 = arith.addf %33, %36 : vector<8x1xf32>
    %c0_29 = arith.constant 0 : index
    %c0_30 = arith.constant 0 : index
    %38 = vector.load %arg8[%c0_29, %c0_30] : memref<8x1xf32, #tpu.memory_space<vmem>>, vector<8x1xf32>
    tpu.vector_store %arg8[%c0_29, %c0_30], %37 {strides = array<i32>} : memref<8x1xf32, #tpu.memory_space<vmem>>, vector<8x1xf32>,
    %c1_i32 = arith.constant 1 : i32
    %39 = arith.cmpi eq, %arg0, %c1_i32 : i32
    %c0_i32_31 = arith.constant 0 : i32
    %40 = arith.cmpi eq, %arg1, %c0_i32_31 : i32
    %41 = arith.andi %39, %40 : i1
    %42 = arith.extui %41 : i1 to i32
    %c0_i32_32 = arith.constant 0 : i32
    %43 = arith.cmpi ne, %42, %c0_i32_32 : i32
    scf.if %43 {
      %c0_33 = arith.constant 0 : index
      %c0_34 = arith.constant 0 : index
      %44 = vector.load %arg7[%c0_33, %c0_34] : memref<8x1xf32, #tpu.memory_space<vmem>>, vector<8x1xf32>
      %cst_35 = arith.constant 0.001953125 : f32
      %45 = vector.broadcast %cst_35 : f32 to vector<8x1xf32>
      %46 = arith.mulf %44, %45 : vector<8x1xf32>
      %c0_36 = arith.constant 0 : index
      %c0_37 = arith.constant 0 : index
      %47 = vector.load %arg8[%c0_36, %c0_37] : memref<8x1xf32, #tpu.memory_space<vmem>>, vector<8x1xf32>
      %cst_38 = arith.constant 0.001953125 : f32
      %48 = vector.broadcast %cst_38 : f32 to vector<8x1xf32>
      %49 = arith.mulf %47, %48 : vector<8x1xf32>
      %50 = arith.mulf %46, %46 : vector<8x1xf32>
      %51 = arith.subf %49, %50 : vector<8x1xf32>
      %c0_39 = arith.constant 0 : index
      %c0_40 = arith.constant 0 : index
      %c0_41 = arith.constant 0 : index
      %52 = vector.load %arg5[%c0_39, %c0_40, %c0_41] : memref<2x8x1xf32, #tpu.memory_space<vmem>>, vector<1x8x1xf32>
      %53 = vector.shape_cast %52 : vector<1x8x1xf32> to vector<8x1xf32>
      %c1_42 = arith.constant 1 : index
      %c0_43 = arith.constant 0 : index
      %c0_44 = arith.constant 0 : index
      %54 = vector.load %arg5[%c1_42, %c0_43, %c0_44] : memref<2x8x1xf32, #tpu.memory_space<vmem>>, vector<1x8x1xf32>
      %55 = vector.shape_cast %54 : vector<1x8x1xf32> to vector<8x1xf32>
      %cst_45 = arith.constant 9.99999974E-6 : f32
      %56 = vector.broadcast %cst_45 : f32 to vector<8x1xf32>
      %57 = arith.addf %51, %56 : vector<8x1xf32>
      %58 = math.rsqrt %57 : vector<8x1xf32>
      %59 = arith.mulf %53, %58 : vector<8x1xf32>
      %60 = arith.mulf %46, %59 : vector<8x1xf32>
      %61 = arith.subf %55, %60 : vector<8x1xf32>
      %c0_46 = arith.constant 0 : index
      %c0_47 = arith.constant 0 : index
      %c0_48 = arith.constant 0 : index
      %62 = vector.load %arg6[%c0_46, %c0_47, %c0_48] : memref<2x8x1xf32, #tpu.memory_space<vmem>>, vector<1x8x1xf32>
      %63 = vector.shape_cast %62 : vector<1x8x1xf32> to vector<8x1xf32>
      %64 = vector.shape_cast %59 : vector<8x1xf32> to vector<1x8x1xf32>
      tpu.vector_store %arg6[%c0_46, %c0_47, %c0_48], %64 {strides = array<i32>} : memref<2x8x1xf32, #tpu.memory_space<vmem>>, vector<1x8x1xf32>,
      %c1_49 = arith.constant 1 : index
      %c0_50 = arith.constant 0 : index
      %c0_51 = arith.constant 0 : index
      %65 = vector.load %arg6[%c1_49, %c0_50, %c0_51] : memref<2x8x1xf32, #tpu.memory_space<vmem>>, vector<1x8x1xf32>
      %66 = vector.shape_cast %65 : vector<1x8x1xf32> to vector<8x1xf32>
      %67 = vector.shape_cast %61 : vector<8x1xf32> to vector<1x8x1xf32>
      tpu.vector_store %arg6[%c1_49, %c0_50, %c0_51], %67 {strides = array<i32>} : memref<2x8x1xf32, #tpu.memory_space<vmem>>, vector<1x8x1xf32>,
    } else {
    }
    return
  }
  func.func @transform_0(%arg0: i32, %arg1: i32) -> (i32, i32, i32) {
    %c0_i32 = arith.constant 0 : i32
    %c0_i32_0 = arith.constant 0 : i32
    return %arg0, %c0_i32, %arg1 : i32, i32, i32
  }
  func.func @transform_1(%arg0: i32, %arg1: i32) -> (i32, i32, i32) {
    %c0_i32 = arith.constant 0 : i32
    %c0_i32_0 = arith.constant 0 : i32
    return %arg0, %c0_i32, %arg1 : i32, i32, i32
  }
  func.func @transform_2(%arg0: i32, %arg1: i32) -> (i32, i32, i32) {
    %c0_i32 = arith.constant 0 : i32
    %c0_i32_0 = arith.constant 0 : i32
    %c0_i32_1 = arith.constant 0 : i32
    %c0_i32_2 = arith.constant 0 : i32
    return %c0_i32, %c0_i32_0, %c0_i32_1 : i32, i32, i32
  }
  func.func @transform_3(%arg0: i32, %arg1: i32) -> (i32, i32, i32) {
    %c0_i32 = arith.constant 0 : i32
    %c0_i32_0 = arith.constant 0 : i32
    %c0_i32_1 = arith.constant 0 : i32
    %c0_i32_2 = arith.constant 0 : i32
    return %c0_i32, %c0_i32_0, %c0_i32_1 : i32, i32, i32
  }
  func.func @transform_4(%arg0: i32, %arg1: i32) -> (i32, i32, i32) {
    %c0_i32 = arith.constant 0 : i32
    %c0_i32_0 = arith.constant 0 : i32
    %c0_i32_1 = arith.constant 0 : i32
    %c0_i32_2 = arith.constant 0 : i32
    return %c0_i32, %c0_i32_0, %c0_i32_1 : i32, i32, i32
  }
}

</mosaic_0001>

<llo_original>
// kernel: ytmt_block_pallas.3
$region0: #{ytmt_block_pallas.3}
  #allocation0 [shape = 'u32[]', space=smem, size = 0x4, offset = 0x4, fixed_abs, tag = 'smem constant byte address 0x4 - core index']
  #allocation1 [shape = 'u32[144,128]{1,0:T(1,128)}', space=vmem, size = 0x12000, scoped, tag = 'internal scratch']
  %s0 = inlined_call_operand.vmem [shape: f32[2,8,1], index: 0, kind: input, shape index: {}]
  %s1 = inlined_call_operand.vmem [shape: f32[2,4,256], index: 1, kind: input, shape index: {}]
  %s2 = inlined_call_operand.vmem [shape: f32[2,4,256], index: 2, kind: input, shape index: {}]
  %s3 = inlined_call_operand.vmem [shape: f32[4,8,4], index: 3, kind: input, shape index: {}]
  %s4 = inlined_call_operand.vmem [shape: f32[2,4,256], index: 4, kind: output, shape index: {0}]
  %s5 = inlined_call_operand.vmem [shape: f32[2,4,256], index: 5, kind: output, shape index: {1}]
  %6 = xla_tuple %s4, %s5
  %s7 = sld [smem:[#allocation0]]
  $region57: #{ytmt_block_pallas.3} parent=0
    _
  %s9 = ssub.s32 1, %s7
  %s10 = scalar_select 0, %s9, %s7
  loop: start=0, step=1, limit=4
  $region2: #{ytmt_block_pallas.3} parent=0 // loop_pre_header
    _
  $region3: #{ytmt_block_pallas.3} parent=0 // loop_header
    %s12 = sphi 0, %s16
    %p13 = scmp.ge.s32.totalorder %s12, 4
    %s19 = sphi 0, %s31
    %s20 = sphi 0, %s27
    %s21 = sphi 0, %s19
    %s22 = sphi 0, %s20
    %s23 = sphi 0, %s21
    %s24 = sphi 0, %s22
    %s32 = sphi 0, %s32
    %s34 = sphi 0, %s32
    %s35 = sphi 0, %s34
    %s49 = sphi 0, %s35
    %s57 = sphi 0, %s59
    %s60 = sphi 0, %s57
    %s61 = sphi 0, %s60
    %s77 = sphi 0, %s61
    %s85 = sphi 0, %s87
    %s88 = sphi 0, %s85
    %s89 = sphi 0, %s88
    %s105 = sphi 0, %s89
    %s109 = sphi 0, %s109
    %s111 = sphi 0, %s109
    %s112 = sphi 0, %s111
    %s126 = sphi 0, %s112
    %s134 = sphi 0, %s136
    %s137 = sphi 0, %s134
    %s138 = sphi 0, %s137
    %s154 = sphi 0, %s138
    %s162 = sphi 0, %s164
    %s165 = sphi 0, %s162
    %s166 = sphi 0, %s165
    %s182 = sphi 0, %s166
  $region4: #{ytmt_block_pallas.3} parent=0 // loop_header_branch
    %15 = sbr.rel (%p13) target = $region8
  $region5: #{ytmt_block_pallas.3} parent=0 // loop_body
    %s17 = ssub.s32 %s12, 1
    %s18 = ssub.s32 %s12, 2
    %s25 = sadd.s32 1, %s20
    %p26 = scmp.ge.s32.totalorder %s25, 1
    %s27 = scalar_select %p26, 0, %s25
    %s28 = sadd.s32 1, %s19
    %s29 = scalar_select %p26, %s28, %s19
    %p30 = scmp.ge.s32.totalorder %s29, 2
    %s31 = scalar_select %p30, 0, %s29
    %s33 = sadd.s32 %s32, 1
    %p36 = scmp.eq.s32.totalorder %s12, 1
    %p37 = scmp.ne.s32.totalorder %s32, %s34
    %p38 = scmp.eq.s32.totalorder %s12, 0
    %p39 = por %p37, %p38
    %p40 = scmp.ne.s32.totalorder %s32, %s34
    %p41 = scmp.eq.s32.totalorder %s17, 1
    %p42 = por %p40, %p41
    %p43 = scmp.ne.s32.totalorder %s34, %s35
    %p44 = scmp.eq.s32.totalorder %s17, 0
    %p45 = por %p43, %p44
    %p46 = scmp.ne.s32.totalorder %s34, %s35
    %p47 = scmp.eq.s32.totalorder %s18, 1
    %p48 = por %p46, %p47
    %p50 = scmp.ne.s32.totalorder %s35, %s49
    %p51 = scmp.eq.s32.totalorder %s18, 0
    %p52 = por %p50, %p51
    %s53 = ssub.s32 %s19, %s31
    %s54 = ssub.s32 %s20, %s27
    %s55 = sor.u32 %s53, %s54
    %p56 = scmp.eq.s32.totalorder %s55, 0
    %s58 = sadd.s32 %s57, 1
    %s59 = scalar_select %p56, %s57, %s58
    %p62 = pneg %p56
    %p63 = scmp.eq.s32.totalorder %s12, 1
    %p64 = por %p62, %p63
    %p65 = scmp.ne.s32.totalorder %s57, %s60
    %p66 = scmp.eq.s32.totalorder %s12, 0
    %p67 = por %p65, %p66
    %p68 = scmp.ne.s32.totalorder %s57, %s60
    %p69 = scmp.eq.s32.totalorder %s17, 1
    %p70 = por %p68, %p69
    %p71 = scmp.ne.s32.totalorder %s60, %s61
    %p72 = scmp.eq.s32.totalorder %s17, 0
    %p73 = por %p71, %p72
    %p74 = scmp.ne.s32.totalorder %s60, %s61
    %p75 = scmp.eq.s32.totalorder %s18, 1
    %p76 = por %p74, %p75
    %p78 = scmp.ne.s32.totalorder %s61, %s77
    %p79 = scmp.eq.s32.totalorder %s18, 0
    %p80 = por %p78, %p79
    %s81 = ssub.s32 %s19, %s31
    %s82 = ssub.s32 %s20, %s27
    %s83 = sor.u32 %s81, %s82
    %p84 = scmp.eq.s32.totalorder %s83, 0
    %s86 = sadd.s32 %s85, 1
    %s87 = scalar_select %p84, %s85, %s86
    %p90 = pneg %p84
    %p91 = scmp.eq.s32.totalorder %s12, 1
    %p92 = por %p90, %p91
    %p93 = scmp.ne.s32.totalorder %s85, %s88
    %p94 = scmp.eq.s32.totalorder %s12, 0
    %p95 = por %p93, %p94
    %p96 = scmp.ne.s32.totalorder %s85, %s88
    %p97 = scmp.eq.s32.totalorder %s17, 1
    %p98 = por %p96, %p97
    %p99 = scmp.ne.s32.totalorder %s88, %s89
    %p100 = scmp.eq.s32.totalorder %s17, 0
    %p101 = por %p99, %p100
    %p102 = scmp.ne.s32.totalorder %s88, %s89
    %p103 = scmp.eq.s32.totalorder %s18, 1
    %p104 = por %p102, %p103
    %p106 = scmp.ne.s32.totalorder %s89, %s105
    %p107 = scmp.eq.s32.totalorder %s18, 0
    %p108 = por %p106, %p107
    %s110 = sadd.s32 %s109, 1
    %p113 = scmp.eq.s32.totalorder %s12, 1
    %p114 = scmp.ne.s32.totalorder %s109, %s111
    %p115 = scmp.eq.s32.totalorder %s12, 0
    %p116 = por %p114, %p115
    %p117 = scmp.ne.s32.totalorder %s109, %s111
    %p118 = scmp.eq.s32.totalorder %s17, 1
    %p119 = por %p117, %p118
    %p120 = scmp.ne.s32.totalorder %s111, %s112
    %p121 = scmp.eq.s32.totalorder %s17, 0
    %p122 = por %p120, %p121
    %p123 = scmp.ne.s32.totalorder %s111, %s112
    %p124 = scmp.eq.s32.totalorder %s18, 1
    %p125 = por %p123, %p124
    %p127 = scmp.ne.s32.totalorder %s112, %s126
    %p128 = scmp.eq.s32.totalorder %s18, 0
    %p129 = por %p127, %p128
    %s130 = ssub.s32 %s19, %s31
    %s131 = ssub.s32 %s20, %s27
    %s132 = sor.u32 %s130, %s131
    %p133 = scmp.eq.s32.totalorder %s132, 0
    %s135 = sadd.s32 %s134, 1
    %s136 = scalar_select %p133, %s134, %s135
    %p139 = pneg %p133
    %p140 = scmp.eq.s32.totalorder %s12, 1
    %p141 = por %p139, %p140
    %p142 = scmp.ne.s32.totalorder %s134, %s137
    %p143 = scmp.eq.s32.totalorder %s12, 0
    %p144 = por %p142, %p143
    %p145 = scmp.ne.s32.totalorder %s134, %s137
    %p146 = scmp.eq.s32.totalorder %s17, 1
    %p147 = por %p145, %p146
    %p148 = scmp.ne.s32.totalorder %s137, %s138
    %p149 = scmp.eq.s32.totalorder %s17, 0
    %p150 = por %p148, %p149
    %p151 = scmp.ne.s32.totalorder %s137, %s138
    %p152 = scmp.eq.s32.totalorder %s18, 1
    %p153 = por %p151, %p152
    %p155 = scmp.ne.s32.totalorder %s138, %s154
    %p156 = scmp.eq.s32.totalorder %s18, 0
    %p157 = por %p155, %p156
    %s158 = ssub.s32 %s19, %s31
    %s159 = ssub.s32 %s20, %s27
    %s160 = sor.u32 %s158, %s159
    %p161 = scmp.eq.s32.totalorder %s160, 0
    %s163 = sadd.s32 %s162, 1
    %s164 = scalar_select %p161, %s162, %s163
    %p167 = pneg %p161
    %p168 = scmp.eq.s32.totalorder %s12, 1
    %p169 = por %p167, %p168
    %p170 = scmp.ne.s32.totalorder %s162, %s165
    %p171 = scmp.eq.s32.totalorder %s12, 0
    %p172 = por %p170, %p171
    %p173 = scmp.ne.s32.totalorder %s162, %s165
    %p174 = scmp.eq.s32.totalorder %s17, 1
    %p175 = por %p173, %p174
    %p176 = scmp.ne.s32.totalorder %s165, %s166
    %p177 = scmp.eq.s32.totalorder %s17, 0
    %p178 = por %p176, %p177
    %p179 = scmp.ne.s32.totalorder %s165, %s166
    %p180 = scmp.eq.s32.totalorder %s18, 1
    %p181 = por %p179, %p180
    %p183 = scmp.ne.s32.totalorder %s166, %s182
    %p184 = scmp.eq.s32.totalorder %s18, 0
    %p185 = por %p183, %p184
    %p186 = scmp.le.s32.totalorder 1, %s12
    %p187 = scmp.lt.s32.totalorder %s12, 3
    %p188 = pnand %p186, %p187
    %p189 = pneg %p188
    // Predicated region
    $region9: #{ytmt_block_pallas.3} parent=5 // pred_check
      _
    $region10: #{ytmt_block_pallas.3} parent=5 // pred_check_branch
      %191 = sbr.rel (%p188) target = $region12
    $region11: #{ytmt_block_pallas.3} parent=5 // pred_region
      %s192 = ssub.s32 %s12, 1
      // Predicated region
      $region13: #{ytmt_block_pallas.3} parent=11 // pred_check
        %p193 = pneg %p45
      $region14: #{ytmt_block_pallas.3} parent=11 // pred_check_branch
        %195 = sbr.rel (%p193) target = $region16
      $region15: #{ytmt_block_pallas.3} parent=11 // pred_region
        _
      $region16: #{ytmt_block_pallas.3} parent=11 // pred_fallthru
        _
      // Predicated region
      $region17: #{ytmt_block_pallas.3} parent=11 // pred_check
        %p196 = pneg %p122
      $region18: #{ytmt_block_pallas.3} parent=11 // pred_check_branch
        %198 = sbr.rel (%p196) target = $region20
      $region19: #{ytmt_block_pallas.3} parent=11 // pred_region
        _
      $region20: #{ytmt_block_pallas.3} parent=11 // pred_fallthru
        _
    $region12: #{ytmt_block_pallas.3} parent=5 // pred_fallthru
      _
    %p199 = scmp.lt.s32.totalorder %s12, 2
    // Predicated region
    $region21: #{ytmt_block_pallas.3} parent=5 // pred_check
      %p200 = pneg %p199
    $region22: #{ytmt_block_pallas.3} parent=5 // pred_check_branch
      %202 = sbr.rel (%p200) target = $region24
    $region23: #{ytmt_block_pallas.3} parent=5 // pred_region
      // Predicated region
      $region25: #{ytmt_block_pallas.3} parent=23 // pred_check
        %p203 = pneg %p67
      $region26: #{ytmt_block_pallas.3} parent=23 // pred_check_branch
        %205 = sbr.rel (%p203) target = $region28
      $region27: #{ytmt_block_pallas.3} parent=23 // pred_region
        %s206 = smul.u32 2, %s20
        %p207 = scmp.lt.s32.totalorder %s19, 1
        %s208 = scalar_select %p207, %s19, 1
        %p209 = scmp.lt.s32.totalorder %s206, 1
        %s210 = scalar_select %p209, %s206, 1
        %s211 = smul.addr %s208, 2
        %s212 = sadd.s32 %s210, %s211
        %s213 = smul.addr %s212, 4
        %s214 = scalar_lea.vmem %s1, %s213
        %s215 = smul.u32 2, %s20
      $region28: #{ytmt_block_pallas.3} parent=23 // pred_fallthru
        _
      // Predicated region
      $region29: #{ytmt_block_pallas.3} parent=23 // pred_check
        %p216 = pneg %p95
      $region30: #{ytmt_block_pallas.3} parent=23 // pred_check_branch
        %218 = sbr.rel (%p216) target = $region32
      $region31: #{ytmt_block_pallas.3} parent=23 // pred_region
        %s219 = smul.u32 2, %s20
        %p220 = scmp.lt.s32.totalorder %s19, 1
        %s221 = scalar_select %p220, %s19, 1
        %p222 = scmp.lt.s32.totalorder %s219, 1
        %s223 = scalar_select %p222, %s219, 1
        %s224 = smul.addr %s221, 2
        %s225 = sadd.s32 %s223, %s224
        %s226 = smul.addr %s225, 4
        %s227 = scalar_lea.vmem %s2, %s226
        %s228 = smul.u32 2, %s20
      $region32: #{ytmt_block_pallas.3} parent=23 // pred_fallthru
        _
    $region24: #{ytmt_block_pallas.3} parent=5 // pred_fallthru
      _
    %p229 = scmp.le.s32.totalorder 1, %s12
    %p230 = scmp.lt.s32.totalorder %s12, 3
    %p231 = pnand %p229, %p230
    %p232 = pneg %p231
    // Predicated region
    $region33: #{ytmt_block_pallas.3} parent=5 // pred_check
      _
    $region34: #{ytmt_block_pallas.3} parent=5 // pred_check_branch
      %234 = sbr.rel (%p231) target = $region36
    $region35: #{ytmt_block_pallas.3} parent=5 // pred_region
      %s235 = ssub.s32 %s12, 1
      %p236 = pneg %p45
      %p237 = pneg %p42
      %s238 = smul.u32 2, %s22
      %p239 = scmp.lt.s32.totalorder %s21, 1
      %s240 = scalar_select %p239, %s21, 1
      %p241 = scmp.lt.s32.totalorder %s238, 1
      %s242 = scalar_select %p241, %s238, 1
      %s243 = smul.addr %s240, 2
      %s244 = sadd.s32 %s242, %s243
      %s245 = smul.addr %s244, 4
      %s246 = scalar_lea.vmem %s1, %s245
      %p247 = pneg %p73
      %p248 = pneg %p70
      %s249 = smul.u32 2, %s22
      %p250 = scmp.lt.s32.totalorder %s21, 1
      %s251 = scalar_select %p250, %s21, 1
      %p252 = scmp.lt.s32.totalorder %s249, 1
      %s253 = scalar_select %p252, %s249, 1
      %s254 = smul.addr %s251, 2
      %s255 = sadd.s32 %s253, %s254
      %s256 = smul.addr %s255, 4
      %s257 = scalar_lea.vmem %s2, %s256
      %p258 = pneg %p101
      %p259 = pneg %p98
      %p260 = pneg %p122
      %p261 = pneg %p119
      %p262 = pneg %p150
      %p263 = pneg %p147
      %s264 = smul.u32 2, %s22
      %p265 = scmp.lt.s32.totalorder %s21, 1
      %s266 = scalar_select %p265, %s21, 1
      %p267 = scmp.lt.s32.totalorder %s264, 1
      %s268 = scalar_select %p267, %s264, 1
      %s269 = smul.addr %s266, 2
      %s270 = sadd.s32 %s268, %s269
      %s271 = smul.addr %s270, 4
      %s272 = scalar_lea.vmem %s4, %s271
      %p273 = pneg %p178
      %p274 = pneg %p175
      %s275 = smul.u32 2, %s22
      %p276 = scmp.lt.s32.totalorder %s21, 1
      %s277 = scalar_select %p276, %s21, 1
      %p278 = scmp.lt.s32.totalorder %s275, 1
      %s279 = scalar_select %p278, %s275, 1
      %s280 = smul.addr %s277, 2
      %s281 = sadd.s32 %s279, %s280
      %s282 = smul.addr %s281, 4
      %s283 = scalar_lea.vmem %s5, %s282
      %s284 = smul.u32 2, %s22
      %p285 = scmp.lt.s32.totalorder %s21, 1
      %s286 = scalar_select %p285, %s21, 1
      %p287 = scmp.lt.s32.totalorder %s284, 1
      %s288 = scalar_select %p287, %s284, 1
      %s289 = smul.addr %s286, 2
      %s290 = sadd.s32 %s288, %s289
      %s291 = smul.addr %s290, 4
      %s292 = scalar_lea.vmem %s1, %s291
      %s293 = smul.u32 2, %s22
      %s294 = smul.u32 2, %s22
      %p295 = scmp.lt.s32.totalorder %s21, 1
      %s296 = scalar_select %p295, %s21, 1
      %p297 = scmp.lt.s32.totalorder %s294, 1
      %s298 = scalar_select %p297, %s294, 1
      %s299 = smul.addr %s296, 2
      %s300 = sadd.s32 %s298, %s299
      %s301 = smul.addr %s300, 4
      %s302 = scalar_lea.vmem %s2, %s301
      %s303 = smul.u32 2, %s22
      %s304 = smul.u32 2, %s22
      %p305 = scmp.lt.s32.totalorder %s21, 1
      %s306 = scalar_select %p305, %s21, 1
      %p307 = scmp.lt.s32.totalorder %s304, 1
      %s308 = scalar_select %p307, %s304, 1
      %s309 = smul.addr %s306, 2
      %s310 = sadd.s32 %s308, %s309
      %s311 = smul.addr %s310, 4
      %s312 = scalar_lea.vmem %s4, %s311
      %s313 = smul.u32 2, %s22
      %s314 = smul.u32 2, %s22
      %p315 = scmp.lt.s32.totalorder %s21, 1
      %s316 = scalar_select %p315, %s21, 1
      %p317 = scmp.lt.s32.totalorder %s314, 1
      %s318 = scalar_select %p317, %s314, 1
      %s319 = smul.addr %s316, 2
      %s320 = sadd.s32 %s318, %s319
      %s321 = smul.addr %s320, 4
      %s322 = scalar_lea.vmem %s5, %s321
      %s323 = smul.u32 2, %s22
      %v324 = vld [vmem:[%s292] sm:$0xff]
      %v325 = vld [vmem:[%s302] sm:$0xff]
      %v326 = vmax.f32 %v324, 0.0
      %v327 = vmax.f32 %v325, 0.0
      %v328 = vld [vmem:[%s3] sm:$0xff]
      %s329 = scalar_lea.vmem %s3, 8
      %v330 = vld [vmem:[%s329] sm:$0xff]
      %v332 = vcombine.high %v327, %v327
      %vm333 = vcmask 31744
      %v335 = vsel %vm333, %v330, 0
      %vm337 = vcmask 1043456
      %v338 = vsel %vm337, %v327, 0
      %v340 = vsel %vm337, %v332, 0
      %342 = vmatprep.subr.mxu0 0.0
      %343 = vmatpush1.msra.mxu0 0.0
      %344 = vmatprep.subr.mxu0 0.0
      %345 = vmatpush1.msra.mxu0 0.0
      %346 = vmatprep.subr.mxu0 0.0
      %347 = vmatpush1.msra.mxu0 0.0
      %348 = vmatprep.subr.mxu0 0.0
      %349 = vmatpush1.msra.mxu0 0.0
      %350 = vmatprep.subr.mxu0 0.0
      %351 = vmatpush1.msra.mxu0 0.0
      %352 = vmatprep.subr.mxu0 0.0
      %353 = vmatpush1.msra.mxu0 0.0
      %354 = vmatprep.subr.mxu0 0.0
      %355 = vmatpush1.msra.mxu0 0.0
      %356 = vmatprep.subr.mxu0 0.0
      %357 = vmatpush1.msra.mxu0 0.0
      %358 = vmatprep.subr.mxu0 0.0
      %359 = vmatpush1.msra.mxu0 0.0
      %360 = vmatprep.subr.mxu0 0.0
      %361 = vmatpush1.msra.mxu0 0.0
      %362 = vmatprep.subr.mxu0 0.0
      %363 = vmatpush1.msra.mxu0 0.0
      %364 = vmatprep.subr.mxu0 0.0
      %365 = vmatpush1.msra.mxu0 0.0
      %366 = vmatprep.subr.mxu0 0.0
      %367 = vmatpush1.msra.mxu0 0.0
      %368 = vmatprep.subr.mxu0 0.0
      %369 = vmatpush1.msra.mxu0 0.0
      %370 = vmatprep.subr.mxu0 0.0
      %371 = vmatpush1.msra.mxu0 0.0
      %372 = vmatprep.subr.mxu0 %v340
      %373 = vmatpush1.msra.mxu0 %v338
      %374 = vmatprep.subr.mxu0 0.0
      %375 = vmatpush2.msra.mxu0 0.0
      %376 = vmatprep.subr.mxu0 0.0
      %377 = vmatpush2.msra.mxu0 0.0
      %378 = vmatprep.subr.mxu0 0.0
      %379 = vmatpush2.msra.mxu0 0.0
      %380 = vmatprep.subr.mxu0 0.0
      %381 = vmatpush2.msra.mxu0 0.0
      %382 = vmatprep.subr.mxu0 0.0
      %383 = vmatpush2.msra.mxu0 0.0
      %384 = vmatprep.subr.mxu0 0.0
      %385 = vmatpush2.msra.mxu0 0.0
      %386 = vmatprep.subr.mxu0 0.0
      %387 = vmatpush2.msra.mxu0 0.0
      %388 = vmatprep.subr.mxu0 0.0
      %389 = vmatpush2.msra.mxu0 0.0
      %390 = vmatprep.subr.mxu0 0.0
      %391 = vmatpush2.msra.mxu0 0.0
      %392 = vmatprep.subr.mxu0 0.0
      %393 = vmatpush2.msra.mxu0 0.0
      %394 = vmatprep.subr.mxu0 0.0
      %395 = vmatpush2.msra.mxu0 0.0
      %396 = vmatprep.subr.mxu0 0.0
      %397 = vmatpush2.msra.mxu0 0.0
      %398 = vmatprep.subr.mxu0 0.0
      %399 = vmatpush2.msra.mxu0 0.0
      %400 = vmatprep.subr.mxu0 0.0
      %401 = vmatpush2.msra.mxu0 0.0
      %402 = vmatprep.subr.mxu0 0.0
      %403 = vmatpush2.msra.mxu0 0.0
      %404 = vmatprep.subr.mxu0 0.0
      %405 = vmatpush2.msra.mxu0 0.0
      %406 = vmatprep.mubr.f32.mxu0 0.0
      %407 = vmatmul.mubr.f32.gmra.mxu0 %v335
      %v408 = vpop.f32.mrf.mxu0
      %v409 = vadd.f32 0.0, %v408
      %v410 = vpop.f32.mrf.mxu0
      %v411 = vadd.f32 0.0, %v410
      %412 = vdwg.mxu0
      %v414 = vcombine.high %v326, %v326
      %v416 = vsel %vm333, %v328, 0
      %v418 = vsel %vm337, %v326, 0
      %v420 = vsel %vm337, %v414, 0
      %422 = vmatprep.subr.mxu0 0.0
      %423 = vmatpush1.msra.mxu0 0.0
      %424 = vmatprep.subr.mxu0 0.0
      %425 = vmatpush1.msra.mxu0 0.0
      %426 = vmatprep.subr.mxu0 0.0
      %427 = vmatpush1.msra.mxu0 0.0
      %428 = vmatprep.subr.mxu0 0.0
      %429 = vmatpush1.msra.mxu0 0.0
      %430 = vmatprep.subr.mxu0 0.0
      %431 = vmatpush1.msra.mxu0 0.0
      %432 = vmatprep.subr.mxu0 0.0
      %433 = vmatpush1.msra.mxu0 0.0
      %434 = vmatprep.subr.mxu0 0.0
      %435 = vmatpush1.msra.mxu0 0.0
      %436 = vmatprep.subr.mxu0 0.0
      %437 = vmatpush1.msra.mxu0 0.0
      %438 = vmatprep.subr.mxu0 0.0
      %439 = vmatpush1.msra.mxu0 0.0
      %440 = vmatprep.subr.mxu0 0.0
      %441 = vmatpush1.msra.mxu0 0.0
      %442 = vmatprep.subr.mxu0 0.0
      %443 = vmatpush1.msra.mxu0 0.0
      %444 = vmatprep.subr.mxu0 0.0
      %445 = vmatpush1.msra.mxu0 0.0
      %446 = vmatprep.subr.mxu0 0.0
      %447 = vmatpush1.msra.mxu0 0.0
      %448 = vmatprep.subr.mxu0 0.0
      %449 = vmatpush1.msra.mxu0 0.0
      %450 = vmatprep.subr.mxu0 0.0
      %451 = vmatpush1.msra.mxu0 0.0
      %452 = vmatprep.subr.mxu0 %v420
      %453 = vmatpush1.msra.mxu0 %v418
      %454 = vmatprep.subr.mxu0 0.0
      %455 = vmatpush2.msra.mxu0 0.0
      %456 = vmatprep.subr.mxu0 0.0
      %457 = vmatpush2.msra.mxu0 0.0
      %458 = vmatprep.subr.mxu0 0.0
      %459 = vmatpush2.msra.mxu0 0.0
      %460 = vmatprep.subr.mxu0 0.0
      %461 = vmatpush2.msra.mxu0 0.0
      %462 = vmatprep.subr.mxu0 0.0
      %463 = vmatpush2.msra.mxu0 0.0
      %464 = vmatprep.subr.mxu0 0.0
      %465 = vmatpush2.msra.mxu0 0.0
      %466 = vmatprep.subr.mxu0 0.0
      %467 = vmatpush2.msra.mxu0 0.0
      %468 = vmatprep.subr.mxu0 0.0
      %469 = vmatpush2.msra.mxu0 0.0
      %470 = vmatprep.subr.mxu0 0.0
      %471 = vmatpush2.msra.mxu0 0.0
      %472 = vmatprep.subr.mxu0 0.0
      %473 = vmatpush2.msra.mxu0 0.0
      %474 = vmatprep.subr.mxu0 0.0
      %475 = vmatpush2.msra.mxu0 0.0
      %476 = vmatprep.subr.mxu0 0.0
      %477 = vmatpush2.msra.mxu0 0.0
      %478 = vmatprep.subr.mxu0 0.0
      %479 = vmatpush2.msra.mxu0 0.0
      %480 = vmatprep.subr.mxu0 0.0
      %481 = vmatpush2.msra.mxu0 0.0
      %482 = vmatprep.subr.mxu0 0.0
      %483 = vmatpush2.msra.mxu0 0.0
      %484 = vmatprep.subr.mxu0 0.0
      %485 = vmatpush2.msra.mxu0 0.0
      %486 = vmatprep.mubr.f32.mxu0 0.0
      %487 = vmatmul.mubr.f32.gmra.mxu0 %v416
      %v488 = vpop.f32.mrf.mxu0
      %v489 = vadd.f32 %v409, %v488
      %v490 = vpop.f32.mrf.mxu0
      %v491 = vadd.f32 %v411, %v490
      %492 = vdwg.mxu0
      %s493 = scalar_lea.vmem %s3, 16
      %v494 = vld [vmem:[%s493] sm:$0xff]
      %v496 = vcombine.high %v324, %v324
      %v498 = vsel %vm333, %v494, 0
      %v500 = vsel %vm337, %v324, 0
      %v502 = vsel %vm337, %v496, 0
      %504 = vmatprep.subr.mxu0 0.0
      %505 = vmatpush1.msra.mxu0 0.0
      %506 = vmatprep.subr.mxu0 0.0
      %507 = vmatpush1.msra.mxu0 0.0
      %508 = vmatprep.subr.mxu0 0.0
      %509 = vmatpush1.msra.mxu0 0.0
      %510 = vmatprep.subr.mxu0 0.0
      %511 = vmatpush1.msra.mxu0 0.0
      %512 = vmatprep.subr.mxu0 0.0
      %513 = vmatpush1.msra.mxu0 0.0
      %514 = vmatprep.subr.mxu0 0.0
      %515 = vmatpush1.msra.mxu0 0.0
      %516 = vmatprep.subr.mxu0 0.0
      %517 = vmatpush1.msra.mxu0 0.0
      %518 = vmatprep.subr.mxu0 0.0
      %519 = vmatpush1.msra.mxu0 0.0
      %520 = vmatprep.subr.mxu0 0.0
      %521 = vmatpush1.msra.mxu0 0.0
      %522 = vmatprep.subr.mxu0 0.0
      %523 = vmatpush1.msra.mxu0 0.0
      %524 = vmatprep.subr.mxu0 0.0
      %525 = vmatpush1.msra.mxu0 0.0
      %526 = vmatprep.subr.mxu0 0.0
      %527 = vmatpush1.msra.mxu0 0.0
      %528 = vmatprep.subr.mxu0 0.0
      %529 = vmatpush1.msra.mxu0 0.0
      %530 = vmatprep.subr.mxu0 0.0
      %531 = vmatpush1.msra.mxu0 0.0
      %532 = vmatprep.subr.mxu0 0.0
      %533 = vmatpush1.msra.mxu0 0.0
      %534 = vmatprep.subr.mxu0 %v502
      %535 = vmatpush1.msra.mxu0 %v500
      %536 = vmatprep.subr.mxu0 0.0
      %537 = vmatpush2.msra.mxu0 0.0
      %538 = vmatprep.subr.mxu0 0.0
      %539 = vmatpush2.msra.mxu0 0.0
      %540 = vmatprep.subr.mxu0 0.0
      %541 = vmatpush2.msra.mxu0 0.0
      %542 = vmatprep.subr.mxu0 0.0
      %543 = vmatpush2.msra.mxu0 0.0
      %544 = vmatprep.subr.mxu0 0.0
      %545 = vmatpush2.msra.mxu0 0.0
      %546 = vmatprep.subr.mxu0 0.0
      %547 = vmatpush2.msra.mxu0 0.0
      %548 = vmatprep.subr.mxu0 0.0
      %549 = vmatpush2.msra.mxu0 0.0
      %550 = vmatprep.subr.mxu0 0.0
      %551 = vmatpush2.msra.mxu0 0.0
      %552 = vmatprep.subr.mxu0 0.0
      %553 = vmatpush2.msra.mxu0 0.0
      %554 = vmatprep.subr.mxu0 0.0
      %555 = vmatpush2.msra.mxu0 0.0
      %556 = vmatprep.subr.mxu0 0.0
      %557 = vmatpush2.msra.mxu0 0.0
      %558 = vmatprep.subr.mxu0 0.0
      %559 = vmatpush2.msra.mxu0 0.0
      %560 = vmatprep.subr.mxu0 0.0
      %561 = vmatpush2.msra.mxu0 0.0
      %562 = vmatprep.subr.mxu0 0.0
      %563 = vmatpush2.msra.mxu0 0.0
      %564 = vmatprep.subr.mxu0 0.0
      %565 = vmatpush2.msra.mxu0 0.0
      %566 = vmatprep.subr.mxu0 0.0
      %567 = vmatpush2.msra.mxu0 0.0
      %568 = vmatprep.mubr.f32.mxu0 0.0
      %569 = vmatmul.mubr.f32.gmra.mxu0 %v498
      %v570 = vpop.f32.mrf.mxu0
      %v571 = vadd.f32 0.0, %v570
      %v572 = vpop.f32.mrf.mxu0
      %v573 = vadd.f32 0.0, %v572
      %574 = vdwg.mxu0
      %v575 = vadd.f32 %v489, %v571
      %v576 = vadd.f32 %v491, %v573
      %s577 = scalar_lea.vmem %s3, 24
      %v578 = vld [vmem:[%s577] sm:$0xff]
      %v580 = vcombine.high %v325, %v325
      %v582 = vsel %vm333, %v578, 0
      %v584 = vsel %vm337, %v325, 0
      %v586 = vsel %vm337, %v580, 0
      %588 = vmatprep.subr.mxu0 0.0
      %589 = vmatpush1.msra.mxu0 0.0
      %590 = vmatprep.subr.mxu0 0.0
      %591 = vmatpush1.msra.mxu0 0.0
      %592 = vmatprep.subr.mxu0 0.0
      %593 = vmatpush1.msra.mxu0 0.0
      %594 = vmatprep.subr.mxu0 0.0
      %595 = vmatpush1.msra.mxu0 0.0
      %596 = vmatprep.subr.mxu0 0.0
      %597 = vmatpush1.msra.mxu0 0.0
      %598 = vmatprep.subr.mxu0 0.0
      %599 = vmatpush1.msra.mxu0 0.0
      %600 = vmatprep.subr.mxu0 0.0
      %601 = vmatpush1.msra.mxu0 0.0
      %602 = vmatprep.subr.mxu0 0.0
      %603 = vmatpush1.msra.mxu0 0.0
      %604 = vmatprep.subr.mxu0 0.0
      %605 = vmatpush1.msra.mxu0 0.0
      %606 = vmatprep.subr.mxu0 0.0
      %607 = vmatpush1.msra.mxu0 0.0
      %608 = vmatprep.subr.mxu0 0.0
      %609 = vmatpush1.msra.mxu0 0.0
      %610 = vmatprep.subr.mxu0 0.0
      %611 = vmatpush1.msra.mxu0 0.0
      %612 = vmatprep.subr.mxu0 0.0
      %613 = vmatpush1.msra.mxu0 0.0
      %614 = vmatprep.subr.mxu0 0.0
      %615 = vmatpush1.msra.mxu0 0.0
      %616 = vmatprep.subr.mxu0 0.0
      %617 = vmatpush1.msra.mxu0 0.0
      %618 = vmatprep.subr.mxu0 %v586
      %619 = vmatpush1.msra.mxu0 %v584
      %620 = vmatprep.subr.mxu0 0.0
      %621 = vmatpush2.msra.mxu0 0.0
      %622 = vmatprep.subr.mxu0 0.0
      %623 = vmatpush2.msra.mxu0 0.0
      %624 = vmatprep.subr.mxu0 0.0
      %625 = vmatpush2.msra.mxu0 0.0
      %626 = vmatprep.subr.mxu0 0.0
      %627 = vmatpush2.msra.mxu0 0.0
      %628 = vmatprep.subr.mxu0 0.0
      %629 = vmatpush2.msra.mxu0 0.0
      %630 = vmatprep.subr.mxu0 0.0
      %631 = vmatpush2.msra.mxu0 0.0
      %632 = vmatprep.subr.mxu0 0.0
      %633 = vmatpush2.msra.mxu0 0.0
      %634 = vmatprep.subr.mxu0 0.0
      %635 = vmatpush2.msra.mxu0 0.0
      %636 = vmatprep.subr.mxu0 0.0
      %637 = vmatpush2.msra.mxu0 0.0
      %638 = vmatprep.subr.mxu0 0.0
      %639 = vmatpush2.msra.mxu0 0.0
      %640 = vmatprep.subr.mxu0 0.0
      %641 = vmatpush2.msra.mxu0 0.0
      %642 = vmatprep.subr.mxu0 0.0
      %643 = vmatpush2.msra.mxu0 0.0
      %644 = vmatprep.subr.mxu0 0.0
      %645 = vmatpush2.msra.mxu0 0.0
      %646 = vmatprep.subr.mxu0 0.0
      %647 = vmatpush2.msra.mxu0 0.0
      %648 = vmatprep.subr.mxu0 0.0
      %649 = vmatpush2.msra.mxu0 0.0
      %650 = vmatprep.subr.mxu0 0.0
      %651 = vmatpush2.msra.mxu0 0.0
      %652 = vmatprep.mubr.f32.mxu0 0.0
      %653 = vmatmul.mubr.f32.gmra.mxu0 %v582
      %v654 = vpop.f32.mrf.mxu0
      %v655 = vadd.f32 0.0, %v654
      %v656 = vpop.f32.mrf.mxu0
      %v657 = vadd.f32 0.0, %v656
      %658 = vdwg.mxu0
      %v659 = vadd.f32 %v575, %v655
      %v660 = vadd.f32 %v576, %v657
      %v661 = vld [vmem:[%s0] sm:$0xff]
      %663 = vset.pattern.permute.xlu0 0
      %664 = vperm.xlu0 %663, %v661
      %v665 = vpop.permute.xlu0 %664
      %v667 = vmul.f32 %v659, %v665
      %v668 = vmul.f32 %v660, %v665
      %s669 = scalar_lea.vmem %s0, 8
      %v670 = vld [vmem:[%s669] sm:$0xff]
      %672 = vset.pattern.permute.xlu0 0
      %673 = vperm.xlu0 %672, %v670
      %v674 = vpop.permute.xlu0 %673
      %v676 = vadd.f32 %v667, %v674
      %v677 = vadd.f32 %v668, %v674
      %v680 = vcombine.low %v676, %v677
      %682 = vst [vmem:[%s312] sm:$0xff] %v680
      %v683 = vcombine.high %v676, %v677
      %685 = vst [vmem:[%s322] sm:$0xff] %v683
      %s686 = smul.u32 2, %s22
      %p687 = scmp.lt.s32.totalorder %s21, 1
      %s688 = scalar_select %p687, %s21, 1
      %p689 = scmp.lt.s32.totalorder %s686, 1
      %s690 = scalar_select %p689, %s686, 1
      %s691 = smul.addr %s688, 2
      %s692 = sadd.s32 %s690, %s691
      %s693 = smul.addr %s692, 4
      %s694 = scalar_lea.vmem %s4, %s693
      %s695 = smul.u32 2, %s22
      %p696 = scmp.lt.s32.totalorder %s21, 1
      %s697 = scalar_select %p696, %s21, 1
      %p698 = scmp.lt.s32.totalorder %s695, 1
      %s699 = scalar_select %p698, %s695, 1
      %s700 = smul.addr %s697, 2
      %s701 = sadd.s32 %s699, %s700
      %s702 = smul.addr %s701, 4
      %s703 = scalar_lea.vmem %s5, %s702
      // Predicated region
      $region37: #{ytmt_block_pallas.3} parent=35 // pred_check
        %p704 = pneg %p147
      $region38: #{ytmt_block_pallas.3} parent=35 // pred_check_branch
        %706 = sbr.rel (%p704) target = $region40
      $region39: #{ytmt_block_pallas.3} parent=35 // pred_region
        %s707 = smul.u32 2, %s22
      $region40: #{ytmt_block_pallas.3} parent=35 // pred_fallthru
        _
      // Predicated region
      $region41: #{ytmt_block_pallas.3} parent=35 // pred_check
        %p708 = pneg %p175
      $region42: #{ytmt_block_pallas.3} parent=35 // pred_check_branch
        %710 = sbr.rel (%p708) target = $region44
      $region43: #{ytmt_block_pallas.3} parent=35 // pred_region
        %s711 = smul.u32 2, %s22
      $region44: #{ytmt_block_pallas.3} parent=35 // pred_fallthru
        _
    $region36: #{ytmt_block_pallas.3} parent=5 // pred_fallthru
      _
    %p712 = scmp.le.s32.totalorder 2, %s12
    // Predicated region
    $region45: #{ytmt_block_pallas.3} parent=5 // pred_check
      %p713 = pneg %p712
    $region46: #{ytmt_block_pallas.3} parent=5 // pred_check_branch
      %715 = sbr.rel (%p713) target = $region48
    $region47: #{ytmt_block_pallas.3} parent=5 // pred_region
      %s716 = ssub.s32 %s12, 2
      // Predicated region
      $region49: #{ytmt_block_pallas.3} parent=47 // pred_check
        %p717 = pneg %p153
      $region50: #{ytmt_block_pallas.3} parent=47 // pred_check_branch
        %719 = sbr.rel (%p717) target = $region52
      $region51: #{ytmt_block_pallas.3} parent=47 // pred_region
        %s720 = smul.u32 2, %s24
        %p721 = scmp.lt.s32.totalorder %s23, 1
        %s722 = scalar_select %p721, %s23, 1
        %p723 = scmp.lt.s32.totalorder %s720, 1
        %s724 = scalar_select %p723, %s720, 1
        %s725 = smul.addr %s722, 2
        %s726 = sadd.s32 %s724, %s725
        %s727 = smul.addr %s726, 4
        %s728 = scalar_lea.vmem %s4, %s727
      $region52: #{ytmt_block_pallas.3} parent=47 // pred_fallthru
        _
      // Predicated region
      $region53: #{ytmt_block_pallas.3} parent=47 // pred_check
        %p729 = pneg %p181
      $region54: #{ytmt_block_pallas.3} parent=47 // pred_check_branch
        %731 = sbr.rel (%p729) target = $region56
      $region55: #{ytmt_block_pallas.3} parent=47 // pred_region
        %s732 = smul.u32 2, %s24
        %p733 = scmp.lt.s32.totalorder %s23, 1
        %s734 = scalar_select %p733, %s23, 1
        %p735 = scmp.lt.s32.totalorder %s732, 1
        %s736 = scalar_select %p735, %s732, 1
        %s737 = smul.addr %s734, 2
        %s738 = sadd.s32 %s736, %s737
        %s739 = smul.addr %s738, 4
        %s740 = scalar_lea.vmem %s5, %s739
      $region56: #{ytmt_block_pallas.3} parent=47 // pred_fallthru
        _
    $region48: #{ytmt_block_pallas.3} parent=5 // pred_fallthru
      _
  $region6: #{ytmt_block_pallas.3} parent=0 // loop_footer
    %s16 = sadd.s32 1, %s12
  $region7: #{ytmt_block_pallas.3} parent=0 // loop_footer_branch
    %11 = sbr.rel target = $region3
  $region8: #{ytmt_block_pallas.3} parent=0 // loop_exit
    _

// kernel: ytmt_block_pallas.2
$region0: #{ytmt_block_pallas.2}
  #allocation0 [shape = 'u32[]', space=smem, size = 0x4, offset = 0x4, fixed_abs, tag = 'smem constant byte address 0x4 - core index']
  #allocation1 [shape = 'u32[144,128]{1,0:T(1,128)}', space=vmem, size = 0x12000, scoped, tag = 'internal scratch']
  #allocation2 [shape = 'f32[8,1]{1,0:T(8,128)}', space=vmem, size = 0x1000, scoped, tag = 'scratch operand']
  #allocation3 [shape = 'f32[8,1]{1,0:T(8,128)}', space=vmem, size = 0x1000, scoped, tag = 'scratch operand']
  %s0 = inlined_call_operand.vmem [shape: f32[2,4,256], index: 0, kind: input, shape index: {}]
  %s1 = inlined_call_operand.vmem [shape: f32[2,4,256], index: 1, kind: input, shape index: {}]
  %s2 = inlined_call_operand.vmem [shape: f32[4,8,4], index: 2, kind: input, shape index: {}]
  %s3 = inlined_call_operand.vmem [shape: f32[2,8,1], index: 3, kind: input, shape index: {}]
  %s4 = inlined_call_operand.vmem [shape: f32[2,8,1], index: 4, kind: output, shape index: {}]
  %s5 = sld [smem:[#allocation0]]
  $region57: #{ytmt_block_pallas.2} parent=0
    _
  %s7 = ssub.s32 1, %s5
  %s8 = scalar_select 0, %s7, %s5
  loop: start=0, step=1, limit=4
  $region2: #{ytmt_block_pallas.2} parent=0 // loop_pre_header
    _
  $region3: #{ytmt_block_pallas.2} parent=0 // loop_header
    %s10 = sphi 0, %s14
    %p11 = scmp.ge.s32.totalorder %s10, 4
    %s17 = sphi 0, %s29
    %s18 = sphi 0, %s25
    %s19 = sphi 0, %s17
    %s20 = sphi 0, %s18
    %s21 = sphi 0, %s19
    %s22 = sphi 0, %s20
    %s34 = sphi 0, %s36
    %s37 = sphi 0, %s34
    %s38 = sphi 0, %s37
    %s54 = sphi 0, %s38
    %s62 = sphi 0, %s64
    %s65 = sphi 0, %s62
    %s66 = sphi 0, %s65
    %s82 = sphi 0, %s66
    %s86 = sphi 0, %s86
    %s88 = sphi 0, %s86
    %s89 = sphi 0, %s88
    %s103 = sphi 0, %s89
    %s107 = sphi 0, %s107
    %s109 = sphi 0, %s107
    %s110 = sphi 0, %s109
    %s124 = sphi 0, %s110
    %s128 = sphi 0, %s128
    %s130 = sphi 0, %s128
    %s131 = sphi 0, %s130
    %s145 = sphi 0, %s131
  $region4: #{ytmt_block_pallas.2} parent=0 // loop_header_branch
    %13 = sbr.rel (%p11) target = $region8
  $region5: #{ytmt_block_pallas.2} parent=0 // loop_body
    %s15 = ssub.s32 %s10, 1
    %s16 = ssub.s32 %s10, 2
    %s23 = sadd.s32 1, %s18
    %p24 = scmp.ge.s32.totalorder %s23, 1
    %s25 = scalar_select %p24, 0, %s23
    %s26 = sadd.s32 1, %s17
    %s27 = scalar_select %p24, %s26, %s17
    %p28 = scmp.ge.s32.totalorder %s27, 2
    %s29 = scalar_select %p28, 0, %s27
    %s30 = ssub.s32 %s17, %s29
    %s31 = ssub.s32 %s18, %s25
    %s32 = sor.u32 %s30, %s31
    %p33 = scmp.eq.s32.totalorder %s32, 0
    %s35 = sadd.s32 %s34, 1
    %s36 = scalar_select %p33, %s34, %s35
    %p39 = pneg %p33
    %p40 = scmp.eq.s32.totalorder %s10, 1
    %p41 = por %p39, %p40
    %p42 = scmp.ne.s32.totalorder %s34, %s37
    %p43 = scmp.eq.s32.totalorder %s10, 0
    %p44 = por %p42, %p43
    %p45 = scmp.ne.s32.totalorder %s34, %s37
    %p46 = scmp.eq.s32.totalorder %s15, 1
    %p47 = por %p45, %p46
    %p48 = scmp.ne.s32.totalorder %s37, %s38
    %p49 = scmp.eq.s32.totalorder %s15, 0
    %p50 = por %p48, %p49
    %p51 = scmp.ne.s32.totalorder %s37, %s38
    %p52 = scmp.eq.s32.totalorder %s16, 1
    %p53 = por %p51, %p52
    %p55 = scmp.ne.s32.totalorder %s38, %s54
    %p56 = scmp.eq.s32.totalorder %s16, 0
    %p57 = por %p55, %p56
    %s58 = ssub.s32 %s17, %s29
    %s59 = ssub.s32 %s18, %s25
    %s60 = sor.u32 %s58, %s59
    %p61 = scmp.eq.s32.totalorder %s60, 0
    %s63 = sadd.s32 %s62, 1
    %s64 = scalar_select %p61, %s62, %s63
    %p67 = pneg %p61
    %p68 = scmp.eq.s32.totalorder %s10, 1
    %p69 = por %p67, %p68
    %p70 = scmp.ne.s32.totalorder %s62, %s65
    %p71 = scmp.eq.s32.totalorder %s10, 0
    %p72 = por %p70, %p71
    %p73 = scmp.ne.s32.totalorder %s62, %s65
    %p74 = scmp.eq.s32.totalorder %s15, 1
    %p75 = por %p73, %p74
    %p76 = scmp.ne.s32.totalorder %s65, %s66
    %p77 = scmp.eq.s32.totalorder %s15, 0
    %p78 = por %p76, %p77
    %p79 = scmp.ne.s32.totalorder %s65, %s66
    %p80 = scmp.eq.s32.totalorder %s16, 1
    %p81 = por %p79, %p80
    %p83 = scmp.ne.s32.totalorder %s66, %s82
    %p84 = scmp.eq.s32.totalorder %s16, 0
    %p85 = por %p83, %p84
    %s87 = sadd.s32 %s86, 1
    %p90 = scmp.eq.s32.totalorder %s10, 1
    %p91 = scmp.ne.s32.totalorder %s86, %s88
    %p92 = scmp.eq.s32.totalorder %s10, 0
    %p93 = por %p91, %p92
    %p94 = scmp.ne.s32.totalorder %s86, %s88
    %p95 = scmp.eq.s32.totalorder %s15, 1
    %p96 = por %p94, %p95
    %p97 = scmp.ne.s32.totalorder %s88, %s89
    %p98 = scmp.eq.s32.totalorder %s15, 0
    %p99 = por %p97, %p98
    %p100 = scmp.ne.s32.totalorder %s88, %s89
    %p101 = scmp.eq.s32.totalorder %s16, 1
    %p102 = por %p100, %p101
    %p104 = scmp.ne.s32.totalorder %s89, %s103
    %p105 = scmp.eq.s32.totalorder %s16, 0
    %p106 = por %p104, %p105
    %s108 = sadd.s32 %s107, 1
    %p111 = scmp.eq.s32.totalorder %s10, 1
    %p112 = scmp.ne.s32.totalorder %s107, %s109
    %p113 = scmp.eq.s32.totalorder %s10, 0
    %p114 = por %p112, %p113
    %p115 = scmp.ne.s32.totalorder %s107, %s109
    %p116 = scmp.eq.s32.totalorder %s15, 1
    %p117 = por %p115, %p116
    %p118 = scmp.ne.s32.totalorder %s109, %s110
    %p119 = scmp.eq.s32.totalorder %s15, 0
    %p120 = por %p118, %p119
    %p121 = scmp.ne.s32.totalorder %s109, %s110
    %p122 = scmp.eq.s32.totalorder %s16, 1
    %p123 = por %p121, %p122
    %p125 = scmp.ne.s32.totalorder %s110, %s124
    %p126 = scmp.eq.s32.totalorder %s16, 0
    %p127 = por %p125, %p126
    %s129 = sadd.s32 %s128, 1
    %p132 = scmp.eq.s32.totalorder %s10, 1
    %p133 = scmp.ne.s32.totalorder %s128, %s130
    %p134 = scmp.eq.s32.totalorder %s10, 0
    %p135 = por %p133, %p134
    %p136 = scmp.ne.s32.totalorder %s128, %s130
    %p137 = scmp.eq.s32.totalorder %s15, 1
    %p138 = por %p136, %p137
    %p139 = scmp.ne.s32.totalorder %s130, %s131
    %p140 = scmp.eq.s32.totalorder %s15, 0
    %p141 = por %p139, %p140
    %p142 = scmp.ne.s32.totalorder %s130, %s131
    %p143 = scmp.eq.s32.totalorder %s16, 1
    %p144 = por %p142, %p143
    %p146 = scmp.ne.s32.totalorder %s131, %s145
    %p147 = scmp.eq.s32.totalorder %s16, 0
    %p148 = por %p146, %p147
    %p149 = scmp.le.s32.totalorder 1, %s10
    %p150 = scmp.lt.s32.totalorder %s10, 3
    %p151 = pnand %p149, %p150
    %p152 = pneg %p151
    // Predicated region
    $region9: #{ytmt_block_pallas.2} parent=5 // pred_check
      _
    $region10: #{ytmt_block_pallas.2} parent=5 // pred_check_branch
      %154 = sbr.rel (%p151) target = $region12
    $region11: #{ytmt_block_pallas.2} parent=5 // pred_region
      %s155 = ssub.s32 %s10, 1
      // Predicated region
      $region13: #{ytmt_block_pallas.2} parent=11 // pred_check
        %p156 = pneg %p99
      $region14: #{ytmt_block_pallas.2} parent=11 // pred_check_branch
        %158 = sbr.rel (%p156) target = $region16
      $region15: #{ytmt_block_pallas.2} parent=11 // pred_region
        _
      $region16: #{ytmt_block_pallas.2} parent=11 // pred_fallthru
        _
      // Predicated region
      $region17: #{ytmt_block_pallas.2} parent=11 // pred_check
        %p159 = pneg %p120
      $region18: #{ytmt_block_pallas.2} parent=11 // pred_check_branch
        %161 = sbr.rel (%p159) target = $region20
      $region19: #{ytmt_block_pallas.2} parent=11 // pred_region
        _
      $region20: #{ytmt_block_pallas.2} parent=11 // pred_fallthru
        _
    $region12: #{ytmt_block_pallas.2} parent=5 // pred_fallthru
      _
    %p162 = scmp.lt.s32.totalorder %s10, 2
    // Predicated region
    $region21: #{ytmt_block_pallas.2} parent=5 // pred_check
      %p163 = pneg %p162
    $region22: #{ytmt_block_pallas.2} parent=5 // pred_check_branch
      %165 = sbr.rel (%p163) target = $region24
    $region23: #{ytmt_block_pallas.2} parent=5 // pred_region
      // Predicated region
      $region25: #{ytmt_block_pallas.2} parent=23 // pred_check
        %p166 = pneg %p44
      $region26: #{ytmt_block_pallas.2} parent=23 // pred_check_branch
        %168 = sbr.rel (%p166) target = $region28
      $region27: #{ytmt_block_pallas.2} parent=23 // pred_region
        %s169 = smul.u32 2, %s18
        %p170 = scmp.lt.s32.totalorder %s17, 1
        %s171 = scalar_select %p170, %s17, 1
        %p172 = scmp.lt.s32.totalorder %s169, 1
        %s173 = scalar_select %p172, %s169, 1
        %s174 = smul.addr %s171, 2
        %s175 = sadd.s32 %s173, %s174
        %s176 = smul.addr %s175, 4
        %s177 = scalar_lea.vmem %s0, %s176
        %s178 = smul.u32 2, %s18
      $region28: #{ytmt_block_pallas.2} parent=23 // pred_fallthru
        _
      // Predicated region
      $region29: #{ytmt_block_pallas.2} parent=23 // pred_check
        %p179 = pneg %p72
      $region30: #{ytmt_block_pallas.2} parent=23 // pred_check_branch
        %181 = sbr.rel (%p179) target = $region32
      $region31: #{ytmt_block_pallas.2} parent=23 // pred_region
        %s182 = smul.u32 2, %s18
        %p183 = scmp.lt.s32.totalorder %s17, 1
        %s184 = scalar_select %p183, %s17, 1
        %p185 = scmp.lt.s32.totalorder %s182, 1
        %s186 = scalar_select %p185, %s182, 1
        %s187 = smul.addr %s184, 2
        %s188 = sadd.s32 %s186, %s187
        %s189 = smul.addr %s188, 4
        %s190 = scalar_lea.vmem %s1, %s189
        %s191 = smul.u32 2, %s18
      $region32: #{ytmt_block_pallas.2} parent=23 // pred_fallthru
        _
    $region24: #{ytmt_block_pallas.2} parent=5 // pred_fallthru
      _
    %p192 = scmp.le.s32.totalorder 1, %s10
    %p193 = scmp.lt.s32.totalorder %s10, 3
    %p194 = pnand %p192, %p193
    %p195 = pneg %p194
    // Predicated region
    $region33: #{ytmt_block_pallas.2} parent=5 // pred_check
      _
    $region34: #{ytmt_block_pallas.2} parent=5 // pred_check_branch
      %197 = sbr.rel (%p194) target = $region36
    $region35: #{ytmt_block_pallas.2} parent=5 // pred_region
      %s198 = ssub.s32 %s10, 1
      %s199 = smul.u32 2, %s20
      %p200 = scmp.lt.s32.totalorder %s19, 1
      %s201 = scalar_select %p200, %s19, 1
      %p202 = scmp.lt.s32.totalorder %s199, 1
      %s203 = scalar_select %p202, %s199, 1
      %s204 = smul.addr %s201, 2
      %s205 = sadd.s32 %s203, %s204
      %s206 = smul.addr %s205, 4
      %s207 = scalar_lea.vmem %s0, %s206
      %p208 = pneg %p50
      %p209 = pneg %p47
      %s210 = smul.u32 2, %s20
      %p211 = scmp.lt.s32.totalorder %s19, 1
      %s212 = scalar_select %p211, %s19, 1
      %p213 = scmp.lt.s32.totalorder %s210, 1
      %s214 = scalar_select %p213, %s210, 1
      %s215 = smul.addr %s212, 2
      %s216 = sadd.s32 %s214, %s215
      %s217 = smul.addr %s216, 4
      %s218 = scalar_lea.vmem %s1, %s217
      %p219 = pneg %p78
      %p220 = pneg %p75
      %p221 = pneg %p99
      %p222 = pneg %p96
      %p223 = pneg %p120
      %p224 = pneg %p117
      %p225 = pneg %p141
      %p226 = pneg %p138
      %s227 = smul.u32 2, %s20
      %p228 = scmp.lt.s32.totalorder %s19, 1
      %s229 = scalar_select %p228, %s19, 1
      %p230 = scmp.lt.s32.totalorder %s227, 1
      %s231 = scalar_select %p230, %s227, 1
      %s232 = smul.addr %s229, 2
      %s233 = sadd.s32 %s231, %s232
      %s234 = smul.addr %s233, 4
      %s235 = scalar_lea.vmem %s0, %s234
      %s236 = smul.u32 2, %s20
      %s237 = smul.u32 2, %s20
      %p238 = scmp.lt.s32.totalorder %s19, 1
      %s239 = scalar_select %p238, %s19, 1
      %p240 = scmp.lt.s32.totalorder %s237, 1
      %s241 = scalar_select %p240, %s237, 1
      %s242 = smul.addr %s239, 2
      %s243 = sadd.s32 %s241, %s242
      %s244 = smul.addr %s243, 4
      %s245 = scalar_lea.vmem %s1, %s244
      %s246 = smul.u32 2, %s20
      %p247 = scmp.eq.s32.totalorder %s19, 0
      %p248 = scmp.eq.s32.totalorder %s20, 0
      %p249 = pnand %p247, %p248
      %p250 = pneg %p249
      // Predicated region
      $region37: #{ytmt_block_pallas.2} parent=35 // pred_check
        _
      $region38: #{ytmt_block_pallas.2} parent=35 // pred_check_branch
        %252 = sbr.rel (%p249) target = $region40
      $region39: #{ytmt_block_pallas.2} parent=35 // pred_region
        %vm253 = vcmask 7168
        %254 = vst.msk [vmem:[#allocation2] sm:$0xff] %vm253, 0.0
        %255 = vst.msk [vmem:[#allocation3] sm:$0xff] %vm253, 0.0
      $region40: #{ytmt_block_pallas.2} parent=35 // pred_fallthru
        _
      %v256 = vld [vmem:[%s235] sm:$0xff]
      %v257 = vld [vmem:[%s245] sm:$0xff]
      %v258 = vmax.f32 %v256, 0.0
      %v259 = vmax.f32 %v257, 0.0
      %v260 = vld [vmem:[%s2] sm:$0xff]
      %s261 = scalar_lea.vmem %s2, 8
      %v262 = vld [vmem:[%s261] sm:$0xff]
      %v264 = vcombine.high %v259, %v259
      %vm265 = vcmask 31744
      %v267 = vsel %vm265, %v262, 0
      %vm269 = vcmask 1043456
      %v270 = vsel %vm269, %v259, 0
      %v272 = vsel %vm269, %v264, 0
      %274 = vmatprep.subr.mxu0 0.0
      %275 = vmatpush1.msra.mxu0 0.0
      %276 = vmatprep.subr.mxu0 0.0
      %277 = vmatpush1.msra.mxu0 0.0
      %278 = vmatprep.subr.mxu0 0.0
      %279 = vmatpush1.msra.mxu0 0.0
      %280 = vmatprep.subr.mxu0 0.0
      %281 = vmatpush1.msra.mxu0 0.0
      %282 = vmatprep.subr.mxu0 0.0
      %283 = vmatpush1.msra.mxu0 0.0
      %284 = vmatprep.subr.mxu0 0.0
      %285 = vmatpush1.msra.mxu0 0.0
      %286 = vmatprep.subr.mxu0 0.0
      %287 = vmatpush1.msra.mxu0 0.0
      %288 = vmatprep.subr.mxu0 0.0
      %289 = vmatpush1.msra.mxu0 0.0
      %290 = vmatprep.subr.mxu0 0.0
      %291 = vmatpush1.msra.mxu0 0.0
      %292 = vmatprep.subr.mxu0 0.0
      %293 = vmatpush1.msra.mxu0 0.0
      %294 = vmatprep.subr.mxu0 0.0
      %295 = vmatpush1.msra.mxu0 0.0
      %296 = vmatprep.subr.mxu0 0.0
      %297 = vmatpush1.msra.mxu0 0.0
      %298 = vmatprep.subr.mxu0 0.0
      %299 = vmatpush1.msra.mxu0 0.0
      %300 = vmatprep.subr.mxu0 0.0
      %301 = vmatpush1.msra.mxu0 0.0
      %302 = vmatprep.subr.mxu0 0.0
      %303 = vmatpush1.msra.mxu0 0.0
      %304 = vmatprep.subr.mxu0 %v272
      %305 = vmatpush1.msra.mxu0 %v270
      %306 = vmatprep.subr.mxu0 0.0
      %307 = vmatpush2.msra.mxu0 0.0
      %308 = vmatprep.subr.mxu0 0.0
      %309 = vmatpush2.msra.mxu0 0.0
      %310 = vmatprep.subr.mxu0 0.0
      %311 = vmatpush2.msra.mxu0 0.0
      %312 = vmatprep.subr.mxu0 0.0
      %313 = vmatpush2.msra.mxu0 0.0
      %314 = vmatprep.subr.mxu0 0.0
      %315 = vmatpush2.msra.mxu0 0.0
      %316 = vmatprep.subr.mxu0 0.0
      %317 = vmatpush2.msra.mxu0 0.0
      %318 = vmatprep.subr.mxu0 0.0
      %319 = vmatpush2.msra.mxu0 0.0
      %320 = vmatprep.subr.mxu0 0.0
      %321 = vmatpush2.msra.mxu0 0.0
      %322 = vmatprep.subr.mxu0 0.0
      %323 = vmatpush2.msra.mxu0 0.0
      %324 = vmatprep.subr.mxu0 0.0
      %325 = vmatpush2.msra.mxu0 0.0
      %326 = vmatprep.subr.mxu0 0.0
      %327 = vmatpush2.msra.mxu0 0.0
      %328 = vmatprep.subr.mxu0 0.0
      %329 = vmatpush2.msra.mxu0 0.0
      %330 = vmatprep.subr.mxu0 0.0
      %331 = vmatpush2.msra.mxu0 0.0
      %332 = vmatprep.subr.mxu0 0.0
      %333 = vmatpush2.msra.mxu0 0.0
      %334 = vmatprep.subr.mxu0 0.0
      %335 = vmatpush2.msra.mxu0 0.0
      %336 = vmatprep.subr.mxu0 0.0
      %337 = vmatpush2.msra.mxu0 0.0
      %338 = vmatprep.mubr.f32.mxu0 0.0
      %339 = vmatmul.mubr.f32.gmra.mxu0 %v267
      %v340 = vpop.f32.mrf.mxu0
      %v341 = vadd.f32 0.0, %v340
      %v342 = vpop.f32.mrf.mxu0
      %v343 = vadd.f32 0.0, %v342
      %344 = vdwg.mxu0
      %v346 = vcombine.high %v258, %v258
      %v348 = vsel %vm265, %v260, 0
      %v350 = vsel %vm269, %v258, 0
      %v352 = vsel %vm269, %v346, 0
      %354 = vmatprep.subr.mxu0 0.0
      %355 = vmatpush1.msra.mxu0 0.0
      %356 = vmatprep.subr.mxu0 0.0
      %357 = vmatpush1.msra.mxu0 0.0
      %358 = vmatprep.subr.mxu0 0.0
      %359 = vmatpush1.msra.mxu0 0.0
      %360 = vmatprep.subr.mxu0 0.0
      %361 = vmatpush1.msra.mxu0 0.0
      %362 = vmatprep.subr.mxu0 0.0
      %363 = vmatpush1.msra.mxu0 0.0
      %364 = vmatprep.subr.mxu0 0.0
      %365 = vmatpush1.msra.mxu0 0.0
      %366 = vmatprep.subr.mxu0 0.0
      %367 = vmatpush1.msra.mxu0 0.0
      %368 = vmatprep.subr.mxu0 0.0
      %369 = vmatpush1.msra.mxu0 0.0
      %370 = vmatprep.subr.mxu0 0.0
      %371 = vmatpush1.msra.mxu0 0.0
      %372 = vmatprep.subr.mxu0 0.0
      %373 = vmatpush1.msra.mxu0 0.0
      %374 = vmatprep.subr.mxu0 0.0
      %375 = vmatpush1.msra.mxu0 0.0
      %376 = vmatprep.subr.mxu0 0.0
      %377 = vmatpush1.msra.mxu0 0.0
      %378 = vmatprep.subr.mxu0 0.0
      %379 = vmatpush1.msra.mxu0 0.0
      %380 = vmatprep.subr.mxu0 0.0
      %381 = vmatpush1.msra.mxu0 0.0
      %382 = vmatprep.subr.mxu0 0.0
      %383 = vmatpush1.msra.mxu0 0.0
      %384 = vmatprep.subr.mxu0 %v352
      %385 = vmatpush1.msra.mxu0 %v350
      %386 = vmatprep.subr.mxu0 0.0
      %387 = vmatpush2.msra.mxu0 0.0
      %388 = vmatprep.subr.mxu0 0.0
      %389 = vmatpush2.msra.mxu0 0.0
      %390 = vmatprep.subr.mxu0 0.0
      %391 = vmatpush2.msra.mxu0 0.0
      %392 = vmatprep.subr.mxu0 0.0
      %393 = vmatpush2.msra.mxu0 0.0
      %394 = vmatprep.subr.mxu0 0.0
      %395 = vmatpush2.msra.mxu0 0.0
      %396 = vmatprep.subr.mxu0 0.0
      %397 = vmatpush2.msra.mxu0 0.0
      %398 = vmatprep.subr.mxu0 0.0
      %399 = vmatpush2.msra.mxu0 0.0
      %400 = vmatprep.subr.mxu0 0.0
      %401 = vmatpush2.msra.mxu0 0.0
      %402 = vmatprep.subr.mxu0 0.0
      %403 = vmatpush2.msra.mxu0 0.0
      %404 = vmatprep.subr.mxu0 0.0
      %405 = vmatpush2.msra.mxu0 0.0
      %406 = vmatprep.subr.mxu0 0.0
      %407 = vmatpush2.msra.mxu0 0.0
      %408 = vmatprep.subr.mxu0 0.0
      %409 = vmatpush2.msra.mxu0 0.0
      %410 = vmatprep.subr.mxu0 0.0
      %411 = vmatpush2.msra.mxu0 0.0
      %412 = vmatprep.subr.mxu0 0.0
      %413 = vmatpush2.msra.mxu0 0.0
      %414 = vmatprep.subr.mxu0 0.0
      %415 = vmatpush2.msra.mxu0 0.0
      %416 = vmatprep.subr.mxu0 0.0
      %417 = vmatpush2.msra.mxu0 0.0
      %418 = vmatprep.mubr.f32.mxu0 0.0
      %419 = vmatmul.mubr.f32.gmra.mxu0 %v348
      %v420 = vpop.f32.mrf.mxu0
      %v421 = vadd.f32 %v341, %v420
      %v422 = vpop.f32.mrf.mxu0
      %v423 = vadd.f32 %v343, %v422
      %424 = vdwg.mxu0
      %s425 = scalar_lea.vmem %s2, 16
      %v426 = vld [vmem:[%s425] sm:$0xff]
      %v428 = vcombine.high %v256, %v256
      %v430 = vsel %vm265, %v426, 0
      %v432 = vsel %vm269, %v256, 0
      %v434 = vsel %vm269, %v428, 0
      %436 = vmatprep.subr.mxu0 0.0
      %437 = vmatpush1.msra.mxu0 0.0
      %438 = vmatprep.subr.mxu0 0.0
      %439 = vmatpush1.msra.mxu0 0.0
      %440 = vmatprep.subr.mxu0 0.0
      %441 = vmatpush1.msra.mxu0 0.0
      %442 = vmatprep.subr.mxu0 0.0
      %443 = vmatpush1.msra.mxu0 0.0
      %444 = vmatprep.subr.mxu0 0.0
      %445 = vmatpush1.msra.mxu0 0.0
      %446 = vmatprep.subr.mxu0 0.0
      %447 = vmatpush1.msra.mxu0 0.0
      %448 = vmatprep.subr.mxu0 0.0
      %449 = vmatpush1.msra.mxu0 0.0
      %450 = vmatprep.subr.mxu0 0.0
      %451 = vmatpush1.msra.mxu0 0.0
      %452 = vmatprep.subr.mxu0 0.0
      %453 = vmatpush1.msra.mxu0 0.0
      %454 = vmatprep.subr.mxu0 0.0
      %455 = vmatpush1.msra.mxu0 0.0
      %456 = vmatprep.subr.mxu0 0.0
      %457 = vmatpush1.msra.mxu0 0.0
      %458 = vmatprep.subr.mxu0 0.0
      %459 = vmatpush1.msra.mxu0 0.0
      %460 = vmatprep.subr.mxu0 0.0
      %461 = vmatpush1.msra.mxu0 0.0
      %462 = vmatprep.subr.mxu0 0.0
      %463 = vmatpush1.msra.mxu0 0.0
      %464 = vmatprep.subr.mxu0 0.0
      %465 = vmatpush1.msra.mxu0 0.0
      %466 = vmatprep.subr.mxu0 %v434
      %467 = vmatpush1.msra.mxu0 %v432
      %468 = vmatprep.subr.mxu0 0.0
      %469 = vmatpush2.msra.mxu0 0.0
      %470 = vmatprep.subr.mxu0 0.0
      %471 = vmatpush2.msra.mxu0 0.0
      %472 = vmatprep.subr.mxu0 0.0
      %473 = vmatpush2.msra.mxu0 0.0
      %474 = vmatprep.subr.mxu0 0.0
      %475 = vmatpush2.msra.mxu0 0.0
      %476 = vmatprep.subr.mxu0 0.0
      %477 = vmatpush2.msra.mxu0 0.0
      %478 = vmatprep.subr.mxu0 0.0
      %479 = vmatpush2.msra.mxu0 0.0
      %480 = vmatprep.subr.mxu0 0.0
      %481 = vmatpush2.msra.mxu0 0.0
      %482 = vmatprep.subr.mxu0 0.0
      %483 = vmatpush2.msra.mxu0 0.0
      %484 = vmatprep.subr.mxu0 0.0
      %485 = vmatpush2.msra.mxu0 0.0
      %486 = vmatprep.subr.mxu0 0.0
      %487 = vmatpush2.msra.mxu0 0.0
      %488 = vmatprep.subr.mxu0 0.0
      %489 = vmatpush2.msra.mxu0 0.0
      %490 = vmatprep.subr.mxu0 0.0
      %491 = vmatpush2.msra.mxu0 0.0
      %492 = vmatprep.subr.mxu0 0.0
      %493 = vmatpush2.msra.mxu0 0.0
      %494 = vmatprep.subr.mxu0 0.0
      %495 = vmatpush2.msra.mxu0 0.0
      %496 = vmatprep.subr.mxu0 0.0
      %497 = vmatpush2.msra.mxu0 0.0
      %498 = vmatprep.subr.mxu0 0.0
      %499 = vmatpush2.msra.mxu0 0.0
      %500 = vmatprep.mubr.f32.mxu0 0.0
      %501 = vmatmul.mubr.f32.gmra.mxu0 %v430
      %v502 = vpop.f32.mrf.mxu0
      %v503 = vadd.f32 0.0, %v502
      %v504 = vpop.f32.mrf.mxu0
      %v505 = vadd.f32 0.0, %v504
      %506 = vdwg.mxu0
      %v507 = vadd.f32 %v421, %v503
      %v508 = vadd.f32 %v423, %v505
      %s509 = scalar_lea.vmem %s2, 24
      %v510 = vld [vmem:[%s509] sm:$0xff]
      %v512 = vcombine.high %v257, %v257
      %v514 = vsel %vm265, %v510, 0
      %v516 = vsel %vm269, %v257, 0
      %v518 = vsel %vm269, %v512, 0
      %520 = vmatprep.subr.mxu0 0.0
      %521 = vmatpush1.msra.mxu0 0.0
      %522 = vmatprep.subr.mxu0 0.0
      %523 = vmatpush1.msra.mxu0 0.0
      %524 = vmatprep.subr.mxu0 0.0
      %525 = vmatpush1.msra.mxu0 0.0
      %526 = vmatprep.subr.mxu0 0.0
      %527 = vmatpush1.msra.mxu0 0.0
      %528 = vmatprep.subr.mxu0 0.0
      %529 = vmatpush1.msra.mxu0 0.0
      %530 = vmatprep.subr.mxu0 0.0
      %531 = vmatpush1.msra.mxu0 0.0
      %532 = vmatprep.subr.mxu0 0.0
      %533 = vmatpush1.msra.mxu0 0.0
      %534 = vmatprep.subr.mxu0 0.0
      %535 = vmatpush1.msra.mxu0 0.0
      %536 = vmatprep.subr.mxu0 0.0
      %537 = vmatpush1.msra.mxu0 0.0
      %538 = vmatprep.subr.mxu0 0.0
      %539 = vmatpush1.msra.mxu0 0.0
      %540 = vmatprep.subr.mxu0 0.0
      %541 = vmatpush1.msra.mxu0 0.0
      %542 = vmatprep.subr.mxu0 0.0
      %543 = vmatpush1.msra.mxu0 0.0
      %544 = vmatprep.subr.mxu0 0.0
      %545 = vmatpush1.msra.mxu0 0.0
      %546 = vmatprep.subr.mxu0 0.0
      %547 = vmatpush1.msra.mxu0 0.0
      %548 = vmatprep.subr.mxu0 0.0
      %549 = vmatpush1.msra.mxu0 0.0
      %550 = vmatprep.subr.mxu0 %v518
      %551 = vmatpush1.msra.mxu0 %v516
      %552 = vmatprep.subr.mxu0 0.0
      %553 = vmatpush2.msra.mxu0 0.0
      %554 = vmatprep.subr.mxu0 0.0
      %555 = vmatpush2.msra.mxu0 0.0
      %556 = vmatprep.subr.mxu0 0.0
      %557 = vmatpush2.msra.mxu0 0.0
      %558 = vmatprep.subr.mxu0 0.0
      %559 = vmatpush2.msra.mxu0 0.0
      %560 = vmatprep.subr.mxu0 0.0
      %561 = vmatpush2.msra.mxu0 0.0
      %562 = vmatprep.subr.mxu0 0.0
      %563 = vmatpush2.msra.mxu0 0.0
      %564 = vmatprep.subr.mxu0 0.0
      %565 = vmatpush2.msra.mxu0 0.0
      %566 = vmatprep.subr.mxu0 0.0
      %567 = vmatpush2.msra.mxu0 0.0
      %568 = vmatprep.subr.mxu0 0.0
      %569 = vmatpush2.msra.mxu0 0.0
      %570 = vmatprep.subr.mxu0 0.0
      %571 = vmatpush2.msra.mxu0 0.0
      %572 = vmatprep.subr.mxu0 0.0
      %573 = vmatpush2.msra.mxu0 0.0
      %574 = vmatprep.subr.mxu0 0.0
      %575 = vmatpush2.msra.mxu0 0.0
      %576 = vmatprep.subr.mxu0 0.0
      %577 = vmatpush2.msra.mxu0 0.0
      %578 = vmatprep.subr.mxu0 0.0
      %579 = vmatpush2.msra.mxu0 0.0
      %580 = vmatprep.subr.mxu0 0.0
      %581 = vmatpush2.msra.mxu0 0.0
      %582 = vmatprep.subr.mxu0 0.0
      %583 = vmatpush2.msra.mxu0 0.0
      %584 = vmatprep.mubr.f32.mxu0 0.0
      %585 = vmatmul.mubr.f32.gmra.mxu0 %v514
      %v586 = vpop.f32.mrf.mxu0
      %v587 = vadd.f32 0.0, %v586
      %v588 = vpop.f32.mrf.mxu0
      %v589 = vadd.f32 0.0, %v588
      %590 = vdwg.mxu0
      %v591 = vadd.f32 %v507, %v587
      %v592 = vadd.f32 %v508, %v589
      %v593 = vld [vmem:[#allocation2] sm:$0xff]
      %v594 = vadd.f32 %v591, %v592
      %595 = vadd.xlane.f32.xlu0 %v594
      %v596 = vpop.xlane.xlu0 %595
      %v597 = vadd.f32 %v593, %v596
      %vm598 = vcmask 7168
      %599 = vst.msk [vmem:[#allocation2] sm:$0xff] %vm598, %v597
      %v600 = vld [vmem:[#allocation3] sm:$0xff]
      %v601 = vmul.f32 %v591, %v591
      %v602 = vmul.f32 %v592, %v592
      %v603 = vadd.f32 %v601, %v602
      %604 = vadd.xlane.f32.xlu0 %v603
      %v605 = vpop.xlane.xlu0 %604
      %v606 = vadd.f32 %v600, %v605
      %607 = vst.msk [vmem:[#allocation3] sm:$0xff] %vm598, %v606
      %p608 = scmp.eq.s32.totalorder %s19, 1
      %p609 = pnand %p608, %p248
      %p610 = pneg %p609
      // Predicated region
      $region41: #{ytmt_block_pallas.2} parent=35 // pred_check
        _
      $region42: #{ytmt_block_pallas.2} parent=35 // pred_check_branch
        %612 = sbr.rel (%p609) target = $region44
      $region43: #{ytmt_block_pallas.2} parent=35 // pred_region
        %v613 = vld [vmem:[#allocation2] sm:$0xff]
        %v614 = vmul.f32 %v613, 0.001953125
        %v615 = vld [vmem:[#allocation3] sm:$0xff]
        %v616 = vmul.f32 %v615, 0.001953125
        %v617 = vmul.f32 %v614, %v614
        %v618 = vsub.f32 %v616, %v617
        %v619 = vld [vmem:[%s3] sm:$0xff]
        %s620 = scalar_lea.vmem %s3, 8
        %v621 = vld [vmem:[%s620] sm:$0xff]
        %v622 = vadd.f32 %v618, 1e-05
        %v623 = vrsqrt.pop %v622
        %v624 = vmul.f32 %v619, %v623
        %v625 = vmul.f32 %v614, %v624
        %v626 = vsub.f32 %v621, %v625
        %627 = vst.msk [vmem:[%s4] sm:$0xff] %vm598, %v624
        %s628 = scalar_lea.vmem %s4, 8
        %629 = vst.msk [vmem:[%s628] sm:$0xff] %vm598, %v626
      $region44: #{ytmt_block_pallas.2} parent=35 // pred_fallthru
        _
      // Predicated region
      $region45: #{ytmt_block_pallas.2} parent=35 // pred_check
        %p630 = pneg %p138
      $region46: #{ytmt_block_pallas.2} parent=35 // pred_check_branch
        %632 = sbr.rel (%p630) target = $region48
      $region47: #{ytmt_block_pallas.2} parent=35 // pred_region
        _
      $region48: #{ytmt_block_pallas.2} parent=35 // pred_fallthru
        _
      // Predicated region
      $region49: #{ytmt_block_pallas.2} parent=35 // pred_check
        %p633 = pneg %p138
      $region50: #{ytmt_block_pallas.2} parent=35 // pred_check_branch
        %635 = sbr.rel (%p633) target = $region52
      $region51: #{ytmt_block_pallas.2} parent=35 // pred_region
        _
      $region52: #{ytmt_block_pallas.2} parent=35 // pred_fallthru
        _
    $region36: #{ytmt_block_pallas.2} parent=5 // pred_fallthru
      _
    %p636 = scmp.le.s32.totalorder 2, %s10
    // Predicated region
    $region53: #{ytmt_block_pallas.2} parent=5 // pred_check
      %p637 = pneg %p636
    $region54: #{ytmt_block_pallas.2} parent=5 // pred_check_branch
      %639 = sbr.rel (%p637) target = $region56
    $region55: #{ytmt_block_pallas.2} parent=5 // pred_region
      %s640 = ssub.s32 %s10, 2
    $region56: #{ytmt_block_pallas.2} parent=5 // pred_fallthru
      _
  $region6: #{ytmt_block_pallas.2} parent=0 // loop_footer
    %s14 = sadd.s32 1, %s10
  $region7: #{ytmt_block_pallas.2} parent=0 // loop_footer_branch
    %9 = sbr.rel target = $region3
  $region8: #{ytmt_block_pallas.2} parent=0 // loop_exit
    _

</llo_original>
